<compile_context>
chip_gen: v5e
topology: v5e:2x2
jax: 0.10.0
libtpu: 0.0.40
codegen_flags: <defaults>
</compile_context>

<pallas_src>
import math

import jax
import jax.numpy as jnp
from jax import lax
from jax.experimental import pallas as pl
from jax.experimental.pallas import tpu as pltpu


def _round_up(x, m):
    return -(-x // m) * m


def _make_sparse_linear_kernel(TB, Lc, n_chunks):
    """Build the kernel for a given batch tile TB, chunk size Lc, #chunks."""

    def kernel(sl_ref, embed_ref, sbias_ref, w_ref, out_ref, w_buf, sem):
        # sl_ref    : SMEM [B_pad, L_pad] int32  (scalar-prefetched shortlist)
        # embed_ref : VMEM [TB, D_pad]           (embeddings for this batch tile)
        # sbias_ref : VMEM [TB, L_pad] f32       (gathered bias for this tile)
        # w_ref     : HBM or VMEM [N, D_pad]     (label weight matrix)
        # out_ref   : VMEM [TB, L_pad]           (logits for this tile)
        # w_buf     : VMEM [2, TB, Lc, D_pad]    (double-buffered gather scratch)
        # sem       : DMA semaphores (2,)        (one per scratch slot)
        t = pl.program_id(0)

        def issue_chunk(c, slot):
            # Issue all TB*Lc row-gather DMAs of chunk `c` back-to-back into
            # scratch slot `slot`.  The static TB-way inner unroll packs SMEM
            # index loads and descriptor issues without per-row loop bubbles.
            off = c * Lc

            @pl.loop(0, Lc)
            def _issue(l):
                for r in range(TB):                      # static unroll
                    idx = sl_ref[t * TB + r, off + l]
                    pltpu.make_async_copy(
                        w_ref.at[pl.ds(idx, 1)],         # (1, D_pad) source row
                        w_buf.at[slot, r, pl.ds(l, 1)],  # (1, D_pad) dest row
                        sem.at[slot],
                    ).start()

        def wait_chunk(slot):
            # Single aggregate wait: DMA semaphores count bytes, and the TB*Lc
            # identical (1, D_pad) copies of this chunk sum to exactly one
            # (TB, Lc, D_pad) buffer's worth of bytes on sem[slot].
            pltpu.make_async_copy(
                w_buf.at[slot], w_buf.at[slot], sem.at[slot]).wait()

        def compute_chunk(c, slot):
            off = c * Lc
            for r in range(TB):                          # TB is small & static
                e_r = embed_ref[pl.ds(r, 1), :]          # (1, D_pad)
                w_r = w_buf[slot, r]                     # (Lc, D_pad)
                # Contract the last axes of both operands (q @ k^T pattern);
                # no materialized transpose of the gathered tile.
                logits = lax.dot_general(
                    e_r, w_r,
                    dimension_numbers=(((1,), (1,)), ((), ())),
                    preferred_element_type=jnp.float32)  # (1, Lc) f32
                out_ref[pl.ds(r, 1), pl.ds(off, Lc)] = (
                    logits + sbias_ref[pl.ds(r, 1), pl.ds(off, Lc)]
                ).astype(out_ref.dtype)

        # Software pipeline over L chunks: gather chunk c+1 while computing c.
        issue_chunk(0, 0)
        for c in range(n_chunks):                        # static chunk loop
            slot = c & 1
            if c + 1 < n_chunks:
                issue_chunk(c + 1, 1 - slot)
            wait_chunk(slot)
            compute_chunk(c, slot)

    return kernel


def sparse_linear_forward(embed, shortlist, weight, bias=None, *,
                          force_hbm_weight=False,
                          vmem_weight_max_bytes=8 << 20,
                          scratch_budget_bytes=12 << 20):
    """logits[b, l] = embed[b] . weight[shortlist[b, l]] + bias[shortlist[b, l]]

    Returns torch-equivalent `out.squeeze()` of the [B, 1, L] result.
    """
    B, D = embed.shape
    Bs, L = shortlist.shape
    N, Dw = weight.shape
    assert Dw == D and Bs == B

    out_dtype = jnp.promote_types(embed.dtype, weight.dtype)
    out_isize = jnp.dtype(out_dtype).itemsize
    e_isize = jnp.dtype(embed.dtype).itemsize
    w_isize = jnp.dtype(weight.dtype).itemsize

    # Dtype-aware batch tile: native sublane packing is 8 rows per 32-bit.
    TB = 8 * max(1, 4 // out_isize)

    # Lane-dense padding: unmasked output stores, whole-lane gather rows.
    # TODO(synk): for production label spaces, store `weight` pre-padded in D
    #             so this pad is not paid per call.
    L_pad = _round_up(L, 128)
    D_pad = _round_up(D, 128)
    B_pad = _round_up(B, TB)

    # Shortlist chunk size for the double-buffered gather scratch; shrink if
    # D is large enough that 2*(TB, Lc, D) would blow the scratch budget
    # (keeps v7x's 64 MiB VMEM and v5e's default scoped limit safe).
    Lc = 128
    while 2 * TB * Lc * D_pad * w_isize > scratch_budget_bytes and Lc > 16:
        Lc //= 2
    n_chunks = L_pad // Lc

    # Clamp ids so an out-of-range shortlist entry can never gather OOB.
    sl = jnp.clip(shortlist.astype(jnp.int32), 0, N - 1)
    sl = jnp.pad(sl, ((0, B_pad - B), (0, L_pad - L)))       # pads gather row 0
    embed_p = jnp.pad(embed, ((0, B_pad - B), (0, D_pad - D)))
    weight_p = jnp.pad(weight, ((0, 0), (0, D_pad - D))) if D_pad != D else weight

    # Bias gather is tiny glue ([B, L] scalars); the heavy gather (weight rows)
    # and the GEMV + bias-add happen inside the Pallas kernel.
    if bias is not None:
        sbias = bias.reshape(-1)[sl].astype(jnp.float32)      # [B_pad, L_pad]
    else:
        sbias = jnp.zeros((B_pad, L_pad), jnp.float32)

    # Fast path: weight resident in VMEM -> gather DMAs become VMEM->VMEM.
    use_vmem_weight = (not force_hbm_weight) and (
        2 * N * D_pad * w_isize <= vmem_weight_max_bytes)
    if use_vmem_weight:
        weight_spec = pl.BlockSpec((N, D_pad), lambda t, sl_ref: (0, 0))
    else:
        weight_spec = pl.BlockSpec(memory_space=pl.ANY)       # stays in HBM

    kernel = _make_sparse_linear_kernel(TB, Lc, n_chunks)

    grid_spec = pltpu.PrefetchScalarGridSpec(
        num_scalar_prefetch=1,                 # shortlist lands in SMEM
        grid=(B_pad // TB,),
        in_specs=[
            pl.BlockSpec((TB, D_pad), lambda t, sl_ref: (t, 0)),   # embed tile
            pl.BlockSpec((TB, L_pad), lambda t, sl_ref: (t, 0)),   # bias tile
            weight_spec,                                           # weight
        ],
        out_specs=pl.BlockSpec((TB, L_pad), lambda t, sl_ref: (t, 0)),
        scratch_shapes=[
            pltpu.VMEM((2, TB, Lc, D_pad), weight.dtype),   # double buffer
            pltpu.SemaphoreType.DMA((2,)),                  # one sem per slot
        ],
    )

    # Explicit VMEM budget (v5e default scoped limit is only 16 MiB; v7x has
    # 64 MiB physical) - request what we need with slack, floor at 32 MiB.
    need_bytes = (2 * TB * (D_pad * e_isize + L_pad * 4 + L_pad * out_isize)
                  + 2 * TB * Lc * D_pad * w_isize
                  + (2 * N * D_pad * w_isize if use_vmem_weight else 0)
                  + (2 << 20))
    vmem_limit = int(min(max(need_bytes, 32 << 20), 96 << 20))

    cost = pl.CostEstimate(
        flops=2 * B_pad * L_pad * D_pad,
        transcendentals=0,
        bytes_accessed=(B_pad * L_pad * D_pad * w_isize     # gathered rows
                        + B_pad * D_pad * e_isize           # embeddings
                        + 2 * B_pad * L_pad * 4))           # bias + logits

    out = pl.pallas_call(
        kernel,
        out_shape=jax.ShapeDtypeStruct((B_pad, L_pad), out_dtype),
        grid_spec=grid_spec,
        compiler_params=pltpu.CompilerParams(
            dimension_semantics=("parallel",),   # rows independent -> 2 TCs on v7x
            vmem_limit_bytes=vmem_limit),
        cost_estimate=cost,
    )(sl, embed_p, sbias, weight_p)

    # torch: (B, 1, L).squeeze()  -> (B, L), or (L,) when B == 1.
    return jnp.squeeze(out[:B, :L].reshape(B, 1, L))


def init_sparse_linear(key, input_size, output_size, padding_idx=None):
    """Deterministic init matching torch reset_parameters():
    kaiming_uniform_(a=sqrt(5)) on [out, in]  ->  U(-1/sqrt(fan_in), 1/sqrt(fan_in))
    bias                                       ->  U(-1/sqrt(fan_in), 1/sqrt(fan_in))
    weight[padding_idx] is zeroed (bias[padding_idx] is NOT, matching torch).
    """
    kw, kb = jax.random.split(key)
    bound = 1.0 / math.sqrt(input_size)
    weight = jax.random.uniform(kw, (output_size, input_size),
                                jnp.float32, -bound, bound)
    bias = jax.random.uniform(kb, (output_size, 1),
                              jnp.float32, -bound, bound)
    if padding_idx is not None:
        weight = weight.at[padding_idx].set(0.0)
    return weight, bias


if __name__ == "__main__":
    B, D, N, L = 2, 32, 64, 8      # batch, input_size, output_size, shortlist len
    padding_idx = N - 1

    key = jax.random.PRNGKey(0)
    k_param, k_embed, k_sl = jax.random.split(key, 3)

    weight, bias = init_sparse_linear(k_param, D, N, padding_idx)
    embed = jax.random.normal(k_embed, (B, D), jnp.float32)
    shortlist = jax.random.randint(k_sl, (B, L), 0, N, jnp.int32)
    shortlist = shortlist.at[0, -1].set(padding_idx)   # exercise the dummy label

    # 1) Default dispatch (weight small -> VMEM-resident fast path).
    out = sparse_linear_forward(embed, shortlist, weight, bias)
    out = jax.block_until_ready(out)
    ref = jnp.einsum("bd,bld->bl", embed, weight[shortlist]) + bias[shortlist, 0]
    assert out.shape == (B, L)
    assert jnp.allclose(out, ref, atol=1e-5, rtol=1e-5), (out, ref)

    # 2) Forced HBM-weight path with multiple L chunks (exercises the
    #    double-buffered gather pipeline and the aggregate per-chunk waits).
    B2, L2 = 5, 300
    k_e2, k_s2 = jax.random.split(jax.random.PRNGKey(1))
    embed2 = jax.random.normal(k_e2, (B2, D), jnp.float32)
    shortlist2 = jax.random.randint(k_s2, (B2, L2), 0, N, jnp.int32)
    out2 = sparse_linear_forward(embed2, shortlist2, weight, bias,
                                 force_hbm_weight=True)
    out2 = jax.block_until_ready(out2)
    ref2 = (jnp.einsum("bd,bld->bl", embed2, weight[shortlist2])
            + bias[shortlist2, 0])
    assert out2.shape == (B2, L2)
    assert jnp.allclose(out2, ref2, atol=1e-5, rtol=1e-5), (out2, ref2)

    print("KERNEL_OK")
</pallas_src>

<mosaic_0001>
module attributes {stable_mosaic.version = 11 : i64} {
  func.func @kernel(%arg0: i32, %arg1: memref<8x128xi32, #tpu.memory_space<smem>>, %arg2: memref<8x128xf32, #tpu.memory_space<vmem>>, %arg3: memref<8x128xf32, #tpu.memory_space<vmem>>, %arg4: memref<64x128xf32, #tpu.memory_space<vmem>>, %arg5: memref<8x128xf32, #tpu.memory_space<vmem>>, %arg6: memref<2x8x128x128xf32, #tpu.memory_space<vmem>>, %arg7: memref<2x!tpu.dma_semaphore, #tpu.memory_space<semaphore_mem>>) attributes {dimension_semantics = [#tpu.dimension_semantics<parallel>], iteration_bounds = array<i64: 1>, scalar_prefetch = 1 : i64, scratch_operands = 2 : i64, tpu.core_type = #tpu.core_type<tc>, window_params = [{transform_indices = @transform_0, window_bounds = array<i64: 8, 128>}, {transform_indices = @transform_1, window_bounds = array<i64: 8, 128>}, {pipeline_mode = #tpu.pipeline_mode<synchronous>, transform_indices = @transform_2, window_bounds = array<i64: 64, 128>}, {transform_indices = @transform_3, window_bounds = array<i64: 8, 128>}]} {
    %c0_i32 = arith.constant 0 : i32
    %c128_i32 = arith.constant 128 : i32
    %0 = arith.addi %c0_i32, %c128_i32 : i32
    %c1_i32 = arith.constant 1 : i32
    scf.for %arg8 = %c0_i32 to %0 step %c1_i32  : i32 {
      %c1_i32_89 = arith.constant 1 : i32
      %63 = arith.muli %arg8, %c1_i32_89 : i32
      %c0_i32_90 = arith.constant 0 : i32
      %64 = arith.addi %c0_i32_90, %63 : i32
      %c8_i32 = arith.constant 8 : i32
      %65 = arith.muli %arg0, %c8_i32 : i32
      %c0_i32_91 = arith.constant 0 : i32
      %66 = arith.addi %65, %c0_i32_91 : i32
      %c0_i32_92 = arith.constant 0 : i32
      %67 = arith.addi %c0_i32_92, %64 : i32
      %68 = arith.index_cast %66 : i32 to index
      %69 = arith.index_cast %67 : i32 to index
      %70 = memref.load %arg1[%68, %69] : memref<8x128xi32, #tpu.memory_space<smem>>
      %c0_i32_93 = arith.constant 0 : i32
      %c0_i32_94 = arith.constant 0 : i32
      %c0_i32_95 = arith.constant 0 : i32
      %c0_i32_96 = arith.constant 0 : i32
      %71 = tpu.memref_slice %arg4[%70, %c0_i32_96] : memref<64x128xf32, #tpu.memory_space<vmem>> -> memref<1x128xf32, #tpu.memory_space<vmem>>
      %c0_i32_97 = arith.constant 0 : i32
      %72 = tpu.memref_slice %arg6[%c0_i32_93, %c0_i32_94, %64, %c0_i32_97] : memref<2x8x128x128xf32, #tpu.memory_space<vmem>> -> memref<1x1x1x128xf32, #tpu.memory_space<vmem>>
      %73 = tpu.memref_squeeze %72 : memref<1x1x1x128xf32, #tpu.memory_space<vmem>> -> memref<1x128xf32, #tpu.memory_space<vmem>>
      %74 = tpu.memref_slice %arg7[%c0_i32_95] : memref<2x!tpu.dma_semaphore, #tpu.memory_space<semaphore_mem>> -> memref<1x!tpu.dma_semaphore, #tpu.memory_space<semaphore_mem>>
      %75 = tpu.memref_squeeze %74 : memref<1x!tpu.dma_semaphore, #tpu.memory_space<semaphore_mem>> -> memref<!tpu.dma_semaphore, #tpu.memory_space<semaphore_mem>>
      tpu.enqueue_dma source(%71 : memref<1x128xf32, #tpu.memory_space<vmem>>) target(%73 : memref<1x128xf32, #tpu.memory_space<vmem>>) target_semaphore(%75 : memref<!tpu.dma_semaphore, #tpu.memory_space<semaphore_mem>>)
      %c8_i32_98 = arith.constant 8 : i32
      %76 = arith.muli %arg0, %c8_i32_98 : i32
      %c1_i32_99 = arith.constant 1 : i32
      %77 = arith.addi %76, %c1_i32_99 : i32
      %c0_i32_100 = arith.constant 0 : i32
      %78 = arith.addi %c0_i32_100, %64 : i32
      %79 = arith.index_cast %77 : i32 to index
      %80 = arith.index_cast %78 : i32 to index
      %81 = memref.load %arg1[%79, %80] : memref<8x128xi32, #tpu.memory_space<smem>>
      %c0_i32_101 = arith.constant 0 : i32
      %c1_i32_102 = arith.constant 1 : i32
      %c0_i32_103 = arith.constant 0 : i32
      %c0_i32_104 = arith.constant 0 : i32
      %82 = tpu.memref_slice %arg4[%81, %c0_i32_104] : memref<64x128xf32, #tpu.memory_space<vmem>> -> memref<1x128xf32, #tpu.memory_space<vmem>>
      %c0_i32_105 = arith.constant 0 : i32
      %83 = tpu.memref_slice %arg6[%c0_i32_101, %c1_i32_102, %64, %c0_i32_105] : memref<2x8x128x128xf32, #tpu.memory_space<vmem>> -> memref<1x1x1x128xf32, #tpu.memory_space<vmem>>
      %84 = tpu.memref_squeeze %83 : memref<1x1x1x128xf32, #tpu.memory_space<vmem>> -> memref<1x128xf32, #tpu.memory_space<vmem>>
      %85 = tpu.memref_slice %arg7[%c0_i32_103] : memref<2x!tpu.dma_semaphore, #tpu.memory_space<semaphore_mem>> -> memref<1x!tpu.dma_semaphore, #tpu.memory_space<semaphore_mem>>
      %86 = tpu.memref_squeeze %85 : memref<1x!tpu.dma_semaphore, #tpu.memory_space<semaphore_mem>> -> memref<!tpu.dma_semaphore, #tpu.memory_space<semaphore_mem>>
      tpu.enqueue_dma source(%82 : memref<1x128xf32, #tpu.memory_space<vmem>>) target(%84 : memref<1x128xf32, #tpu.memory_space<vmem>>) target_semaphore(%86 : memref<!tpu.dma_semaphore, #tpu.memory_space<semaphore_mem>>)
      %c8_i32_106 = arith.constant 8 : i32
      %87 = arith.muli %arg0, %c8_i32_106 : i32
      %c2_i32 = arith.constant 2 : i32
      %88 = arith.addi %87, %c2_i32 : i32
      %c0_i32_107 = arith.constant 0 : i32
      %89 = arith.addi %c0_i32_107, %64 : i32
      %90 = arith.index_cast %88 : i32 to index
      %91 = arith.index_cast %89 : i32 to index
      %92 = memref.load %arg1[%90, %91] : memref<8x128xi32, #tpu.memory_space<smem>>
      %c0_i32_108 = arith.constant 0 : i32
      %c2_i32_109 = arith.constant 2 : i32
      %c0_i32_110 = arith.constant 0 : i32
      %c0_i32_111 = arith.constant 0 : i32
      %93 = tpu.memref_slice %arg4[%92, %c0_i32_111] : memref<64x128xf32, #tpu.memory_space<vmem>> -> memref<1x128xf32, #tpu.memory_space<vmem>>
      %c0_i32_112 = arith.constant 0 : i32
      %94 = tpu.memref_slice %arg6[%c0_i32_108, %c2_i32_109, %64, %c0_i32_112] : memref<2x8x128x128xf32, #tpu.memory_space<vmem>> -> memref<1x1x1x128xf32, #tpu.memory_space<vmem>>
      %95 = tpu.memref_squeeze %94 : memref<1x1x1x128xf32, #tpu.memory_space<vmem>> -> memref<1x128xf32, #tpu.memory_space<vmem>>
      %96 = tpu.memref_slice %arg7[%c0_i32_110] : memref<2x!tpu.dma_semaphore, #tpu.memory_space<semaphore_mem>> -> memref<1x!tpu.dma_semaphore, #tpu.memory_space<semaphore_mem>>
      %97 = tpu.memref_squeeze %96 : memref<1x!tpu.dma_semaphore, #tpu.memory_space<semaphore_mem>> -> memref<!tpu.dma_semaphore, #tpu.memory_space<semaphore_mem>>
      tpu.enqueue_dma source(%93 : memref<1x128xf32, #tpu.memory_space<vmem>>) target(%95 : memref<1x128xf32, #tpu.memory_space<vmem>>) target_semaphore(%97 : memref<!tpu.dma_semaphore, #tpu.memory_space<semaphore_mem>>)
      %c8_i32_113 = arith.constant 8 : i32
      %98 = arith.muli %arg0, %c8_i32_113 : i32
      %c3_i32 = arith.constant 3 : i32
      %99 = arith.addi %98, %c3_i32 : i32
      %c0_i32_114 = arith.constant 0 : i32
      %100 = arith.addi %c0_i32_114, %64 : i32
      %101 = arith.index_cast %99 : i32 to index
      %102 = arith.index_cast %100 : i32 to index
      %103 = memref.load %arg1[%101, %102] : memref<8x128xi32, #tpu.memory_space<smem>>
      %c0_i32_115 = arith.constant 0 : i32
      %c3_i32_116 = arith.constant 3 : i32
      %c0_i32_117 = arith.constant 0 : i32
      %c0_i32_118 = arith.constant 0 : i32
      %104 = tpu.memref_slice %arg4[%103, %c0_i32_118] : memref<64x128xf32, #tpu.memory_space<vmem>> -> memref<1x128xf32, #tpu.memory_space<vmem>>
      %c0_i32_119 = arith.constant 0 : i32
      %105 = tpu.memref_slice %arg6[%c0_i32_115, %c3_i32_116, %64, %c0_i32_119] : memref<2x8x128x128xf32, #tpu.memory_space<vmem>> -> memref<1x1x1x128xf32, #tpu.memory_space<vmem>>
      %106 = tpu.memref_squeeze %105 : memref<1x1x1x128xf32, #tpu.memory_space<vmem>> -> memref<1x128xf32, #tpu.memory_space<vmem>>
      %107 = tpu.memref_slice %arg7[%c0_i32_117] : memref<2x!tpu.dma_semaphore, #tpu.memory_space<semaphore_mem>> -> memref<1x!tpu.dma_semaphore, #tpu.memory_space<semaphore_mem>>
      %108 = tpu.memref_squeeze %107 : memref<1x!tpu.dma_semaphore, #tpu.memory_space<semaphore_mem>> -> memref<!tpu.dma_semaphore, #tpu.memory_space<semaphore_mem>>
      tpu.enqueue_dma source(%104 : memref<1x128xf32, #tpu.memory_space<vmem>>) target(%106 : memref<1x128xf32, #tpu.memory_space<vmem>>) target_semaphore(%108 : memref<!tpu.dma_semaphore, #tpu.memory_space<semaphore_mem>>)
      %c8_i32_120 = arith.constant 8 : i32
      %109 = arith.muli %arg0, %c8_i32_120 : i32
      %c4_i32 = arith.constant 4 : i32
      %110 = arith.addi %109, %c4_i32 : i32
      %c0_i32_121 = arith.constant 0 : i32
      %111 = arith.addi %c0_i32_121, %64 : i32
      %112 = arith.index_cast %110 : i32 to index
      %113 = arith.index_cast %111 : i32 to index
      %114 = memref.load %arg1[%112, %113] : memref<8x128xi32, #tpu.memory_space<smem>>
      %c0_i32_122 = arith.constant 0 : i32
      %c4_i32_123 = arith.constant 4 : i32
      %c0_i32_124 = arith.constant 0 : i32
      %c0_i32_125 = arith.constant 0 : i32
      %115 = tpu.memref_slice %arg4[%114, %c0_i32_125] : memref<64x128xf32, #tpu.memory_space<vmem>> -> memref<1x128xf32, #tpu.memory_space<vmem>>
      %c0_i32_126 = arith.constant 0 : i32
      %116 = tpu.memref_slice %arg6[%c0_i32_122, %c4_i32_123, %64, %c0_i32_126] : memref<2x8x128x128xf32, #tpu.memory_space<vmem>> -> memref<1x1x1x128xf32, #tpu.memory_space<vmem>>
      %117 = tpu.memref_squeeze %116 : memref<1x1x1x128xf32, #tpu.memory_space<vmem>> -> memref<1x128xf32, #tpu.memory_space<vmem>>
      %118 = tpu.memref_slice %arg7[%c0_i32_124] : memref<2x!tpu.dma_semaphore, #tpu.memory_space<semaphore_mem>> -> memref<1x!tpu.dma_semaphore, #tpu.memory_space<semaphore_mem>>
      %119 = tpu.memref_squeeze %118 : memref<1x!tpu.dma_semaphore, #tpu.memory_space<semaphore_mem>> -> memref<!tpu.dma_semaphore, #tpu.memory_space<semaphore_mem>>
      tpu.enqueue_dma source(%115 : memref<1x128xf32, #tpu.memory_space<vmem>>) target(%117 : memref<1x128xf32, #tpu.memory_space<vmem>>) target_semaphore(%119 : memref<!tpu.dma_semaphore, #tpu.memory_space<semaphore_mem>>)
      %c8_i32_127 = arith.constant 8 : i32
      %120 = arith.muli %arg0, %c8_i32_127 : i32
      %c5_i32 = arith.constant 5 : i32
      %121 = arith.addi %120, %c5_i32 : i32
      %c0_i32_128 = arith.constant 0 : i32
      %122 = arith.addi %c0_i32_128, %64 : i32
      %123 = arith.index_cast %121 : i32 to index
      %124 = arith.index_cast %122 : i32 to index
      %125 = memref.load %arg1[%123, %124] : memref<8x128xi32, #tpu.memory_space<smem>>
      %c0_i32_129 = arith.constant 0 : i32
      %c5_i32_130 = arith.constant 5 : i32
      %c0_i32_131 = arith.constant 0 : i32
      %c0_i32_132 = arith.constant 0 : i32
      %126 = tpu.memref_slice %arg4[%125, %c0_i32_132] : memref<64x128xf32, #tpu.memory_space<vmem>> -> memref<1x128xf32, #tpu.memory_space<vmem>>
      %c0_i32_133 = arith.constant 0 : i32
      %127 = tpu.memref_slice %arg6[%c0_i32_129, %c5_i32_130, %64, %c0_i32_133] : memref<2x8x128x128xf32, #tpu.memory_space<vmem>> -> memref<1x1x1x128xf32, #tpu.memory_space<vmem>>
      %128 = tpu.memref_squeeze %127 : memref<1x1x1x128xf32, #tpu.memory_space<vmem>> -> memref<1x128xf32, #tpu.memory_space<vmem>>
      %129 = tpu.memref_slice %arg7[%c0_i32_131] : memref<2x!tpu.dma_semaphore, #tpu.memory_space<semaphore_mem>> -> memref<1x!tpu.dma_semaphore, #tpu.memory_space<semaphore_mem>>
      %130 = tpu.memref_squeeze %129 : memref<1x!tpu.dma_semaphore, #tpu.memory_space<semaphore_mem>> -> memref<!tpu.dma_semaphore, #tpu.memory_space<semaphore_mem>>
      tpu.enqueue_dma source(%126 : memref<1x128xf32, #tpu.memory_space<vmem>>) target(%128 : memref<1x128xf32, #tpu.memory_space<vmem>>) target_semaphore(%130 : memref<!tpu.dma_semaphore, #tpu.memory_space<semaphore_mem>>)
      %c8_i32_134 = arith.constant 8 : i32
      %131 = arith.muli %arg0, %c8_i32_134 : i32
      %c6_i32 = arith.constant 6 : i32
      %132 = arith.addi %131, %c6_i32 : i32
      %c0_i32_135 = arith.constant 0 : i32
      %133 = arith.addi %c0_i32_135, %64 : i32
      %134 = arith.index_cast %132 : i32 to index
      %135 = arith.index_cast %133 : i32 to index
      %136 = memref.load %arg1[%134, %135] : memref<8x128xi32, #tpu.memory_space<smem>>
      %c0_i32_136 = arith.constant 0 : i32
      %c6_i32_137 = arith.constant 6 : i32
      %c0_i32_138 = arith.constant 0 : i32
      %c0_i32_139 = arith.constant 0 : i32
      %137 = tpu.memref_slice %arg4[%136, %c0_i32_139] : memref<64x128xf32, #tpu.memory_space<vmem>> -> memref<1x128xf32, #tpu.memory_space<vmem>>
      %c0_i32_140 = arith.constant 0 : i32
      %138 = tpu.memref_slice %arg6[%c0_i32_136, %c6_i32_137, %64, %c0_i32_140] : memref<2x8x128x128xf32, #tpu.memory_space<vmem>> -> memref<1x1x1x128xf32, #tpu.memory_space<vmem>>
      %139 = tpu.memref_squeeze %138 : memref<1x1x1x128xf32, #tpu.memory_space<vmem>> -> memref<1x128xf32, #tpu.memory_space<vmem>>
      %140 = tpu.memref_slice %arg7[%c0_i32_138] : memref<2x!tpu.dma_semaphore, #tpu.memory_space<semaphore_mem>> -> memref<1x!tpu.dma_semaphore, #tpu.memory_space<semaphore_mem>>
      %141 = tpu.memref_squeeze %140 : memref<1x!tpu.dma_semaphore, #tpu.memory_space<semaphore_mem>> -> memref<!tpu.dma_semaphore, #tpu.memory_space<semaphore_mem>>
      tpu.enqueue_dma source(%137 : memref<1x128xf32, #tpu.memory_space<vmem>>) target(%139 : memref<1x128xf32, #tpu.memory_space<vmem>>) target_semaphore(%141 : memref<!tpu.dma_semaphore, #tpu.memory_space<semaphore_mem>>)
      %c8_i32_141 = arith.constant 8 : i32
      %142 = arith.muli %arg0, %c8_i32_141 : i32
      %c7_i32 = arith.constant 7 : i32
      %143 = arith.addi %142, %c7_i32 : i32
      %c0_i32_142 = arith.constant 0 : i32
      %144 = arith.addi %c0_i32_142, %64 : i32
      %145 = arith.index_cast %143 : i32 to index
      %146 = arith.index_cast %144 : i32 to index
      %147 = memref.load %arg1[%145, %146] : memref<8x128xi32, #tpu.memory_space<smem>>
      %c0_i32_143 = arith.constant 0 : i32
      %c7_i32_144 = arith.constant 7 : i32
      %c0_i32_145 = arith.constant 0 : i32
      %c0_i32_146 = arith.constant 0 : i32
      %148 = tpu.memref_slice %arg4[%147, %c0_i32_146] : memref<64x128xf32, #tpu.memory_space<vmem>> -> memref<1x128xf32, #tpu.memory_space<vmem>>
      %c0_i32_147 = arith.constant 0 : i32
      %149 = tpu.memref_slice %arg6[%c0_i32_143, %c7_i32_144, %64, %c0_i32_147] : memref<2x8x128x128xf32, #tpu.memory_space<vmem>> -> memref<1x1x1x128xf32, #tpu.memory_space<vmem>>
      %150 = tpu.memref_squeeze %149 : memref<1x1x1x128xf32, #tpu.memory_space<vmem>> -> memref<1x128xf32, #tpu.memory_space<vmem>>
      %151 = tpu.memref_slice %arg7[%c0_i32_145] : memref<2x!tpu.dma_semaphore, #tpu.memory_space<semaphore_mem>> -> memref<1x!tpu.dma_semaphore, #tpu.memory_space<semaphore_mem>>
      %152 = tpu.memref_squeeze %151 : memref<1x!tpu.dma_semaphore, #tpu.memory_space<semaphore_mem>> -> memref<!tpu.dma_semaphore, #tpu.memory_space<semaphore_mem>>
      tpu.enqueue_dma source(%148 : memref<1x128xf32, #tpu.memory_space<vmem>>) target(%150 : memref<1x128xf32, #tpu.memory_space<vmem>>) target_semaphore(%152 : memref<!tpu.dma_semaphore, #tpu.memory_space<semaphore_mem>>)
    }
    %c128_i32_0 = arith.constant 128 : i32
    %c0_i32_1 = arith.constant 0 : i32
    %c0_i32_2 = arith.constant 0 : i32
    %c0_i32_3 = arith.constant 0 : i32
    %c0_i32_4 = arith.constant 0 : i32
    %c0_i32_5 = arith.constant 0 : i32
    %c0_i32_6 = arith.constant 0 : i32
    %1 = tpu.memref_slice %arg6[%c0_i32_1, %c0_i32_4, %c0_i32_5, %c0_i32_6] : memref<2x8x128x128xf32, #tpu.memory_space<vmem>> -> memref<1x8x128x128xf32, #tpu.memory_space<vmem>>
    %2 = tpu.memref_squeeze %1 : memref<1x8x128x128xf32, #tpu.memory_space<vmem>> -> memref<8x128x128xf32, #tpu.memory_space<vmem>>
    %c0_i32_7 = arith.constant 0 : i32
    %c0_i32_8 = arith.constant 0 : i32
    %c0_i32_9 = arith.constant 0 : i32
    %3 = tpu.memref_slice %arg6[%c0_i32_2, %c0_i32_7, %c0_i32_8, %c0_i32_9] : memref<2x8x128x128xf32, #tpu.memory_space<vmem>> -> memref<1x8x128x128xf32, #tpu.memory_space<vmem>>
    %4 = tpu.memref_squeeze %3 : memref<1x8x128x128xf32, #tpu.memory_space<vmem>> -> memref<8x128x128xf32, #tpu.memory_space<vmem>>
    %5 = tpu.memref_slice %arg7[%c0_i32_3] : memref<2x!tpu.dma_semaphore, #tpu.memory_space<semaphore_mem>> -> memref<1x!tpu.dma_semaphore, #tpu.memory_space<semaphore_mem>>
    %6 = tpu.memref_squeeze %5 : memref<1x!tpu.dma_semaphore, #tpu.memory_space<semaphore_mem>> -> memref<!tpu.dma_semaphore, #tpu.memory_space<semaphore_mem>>
    tpu.wait_dma2 semaphore(%6 : memref<!tpu.dma_semaphore, #tpu.memory_space<semaphore_mem>>) src(%2 : memref<8x128x128xf32, #tpu.memory_space<vmem>>) dst(%4 : memref<8x128x128xf32, #tpu.memory_space<vmem>>)
    %c0 = arith.constant 0 : index
    %c0_10 = arith.constant 0 : index
    %7 = vector.load %arg2[%c0, %c0_10] : memref<8x128xf32, #tpu.memory_space<vmem>>, vector<1x128xf32>
    %c0_11 = arith.constant 0 : index
    %c0_12 = arith.constant 0 : index
    %c0_13 = arith.constant 0 : index
    %c0_14 = arith.constant 0 : index
    %8 = vector.load %arg6[%c0_11, %c0_12, %c0_13, %c0_14] : memref<2x8x128x128xf32, #tpu.memory_space<vmem>>, vector<1x1x128x128xf32>
    %9 = vector.shape_cast %8 : vector<1x1x128x128xf32> to vector<128x128xf32>
    %cst = arith.constant dense<0.000000e+00> : vector<1x128xf32>
    %10 = tpu.matmul %7, %9, %cst {dimension_numbers = #tpu.dot_dimension_numbers<[1], [1], [0], [0], [0, 0, 1, 0], [], []>} : vector<1x128xf32>, vector<128x128xf32>, vector<1x128xf32> -> vector<1x128xf32>
    %c0_15 = arith.constant 0 : index
    %c0_16 = arith.constant 0 : index
    %11 = vector.load %arg3[%c0_15, %c0_16] : memref<8x128xf32, #tpu.memory_space<vmem>>, vector<1x128xf32>
    %12 = arith.addf %10, %11 : vector<1x128xf32>
    %c0_17 = arith.constant 0 : index
    %c0_18 = arith.constant 0 : index
    %13 = vector.load %arg5[%c0_17, %c0_18] : memref<8x128xf32, #tpu.memory_space<vmem>>, vector<1x128xf32>
    tpu.vector_store %arg5[%c0_17, %c0_18], %12 {strides = array<i32>} : memref<8x128xf32, #tpu.memory_space<vmem>>, vector<1x128xf32>,
    %c1 = arith.constant 1 : index
    %c0_19 = arith.constant 0 : index
    %14 = vector.load %arg2[%c1, %c0_19] : memref<8x128xf32, #tpu.memory_space<vmem>>, vector<1x128xf32>
    %c0_20 = arith.constant 0 : index
    %c1_21 = arith.constant 1 : index
    %c0_22 = arith.constant 0 : index
    %c0_23 = arith.constant 0 : index
    %15 = vector.load %arg6[%c0_20, %c1_21, %c0_22, %c0_23] : memref<2x8x128x128xf32, #tpu.memory_space<vmem>>, vector<1x1x128x128xf32>
    %16 = vector.shape_cast %15 : vector<1x1x128x128xf32> to vector<128x128xf32>
    %cst_24 = arith.constant dense<0.000000e+00> : vector<1x128xf32>
    %17 = tpu.matmul %14, %16, %cst_24 {dimension_numbers = #tpu.dot_dimension_numbers<[1], [1], [0], [0], [0, 0, 1, 0], [], []>} : vector<1x128xf32>, vector<128x128xf32>, vector<1x128xf32> -> vector<1x128xf32>
    %c1_25 = arith.constant 1 : index
    %c0_26 = arith.constant 0 : index
    %18 = vector.load %arg3[%c1_25, %c0_26] : memref<8x128xf32, #tpu.memory_space<vmem>>, vector<1x128xf32>
    %19 = arith.addf %17, %18 : vector<1x128xf32>
    %c1_27 = arith.constant 1 : index
    %c0_28 = arith.constant 0 : index
    %20 = vector.load %arg5[%c1_27, %c0_28] : memref<8x128xf32, #tpu.memory_space<vmem>>, vector<1x128xf32>
    tpu.vector_store %arg5[%c1_27, %c0_28], %19 {strides = array<i32>} : memref<8x128xf32, #tpu.memory_space<vmem>>, vector<1x128xf32>,
    %c2 = arith.constant 2 : index
    %c0_29 = arith.constant 0 : index
    %21 = vector.load %arg2[%c2, %c0_29] : memref<8x128xf32, #tpu.memory_space<vmem>>, vector<1x128xf32>
    %c0_30 = arith.constant 0 : index
    %c2_31 = arith.constant 2 : index
    %c0_32 = arith.constant 0 : index
    %c0_33 = arith.constant 0 : index
    %22 = vector.load %arg6[%c0_30, %c2_31, %c0_32, %c0_33] : memref<2x8x128x128xf32, #tpu.memory_space<vmem>>, vector<1x1x128x128xf32>
    %23 = vector.shape_cast %22 : vector<1x1x128x128xf32> to vector<128x128xf32>
    %cst_34 = arith.constant dense<0.000000e+00> : vector<1x128xf32>
    %24 = tpu.matmul %21, %23, %cst_34 {dimension_numbers = #tpu.dot_dimension_numbers<[1], [1], [0], [0], [0, 0, 1, 0], [], []>} : vector<1x128xf32>, vector<128x128xf32>, vector<1x128xf32> -> vector<1x128xf32>
    %c2_35 = arith.constant 2 : index
    %c0_36 = arith.constant 0 : index
    %25 = vector.load %arg3[%c2_35, %c0_36] : memref<8x128xf32, #tpu.memory_space<vmem>>, vector<1x128xf32>
    %26 = arith.addf %24, %25 : vector<1x128xf32>
    %c2_37 = arith.constant 2 : index
    %c0_38 = arith.constant 0 : index
    %27 = vector.load %arg5[%c2_37, %c0_38] : memref<8x128xf32, #tpu.memory_space<vmem>>, vector<1x128xf32>
    tpu.vector_store %arg5[%c2_37, %c0_38], %26 {strides = array<i32>} : memref<8x128xf32, #tpu.memory_space<vmem>>, vector<1x128xf32>,
    %c3 = arith.constant 3 : index
    %c0_39 = arith.constant 0 : index
    %28 = vector.load %arg2[%c3, %c0_39] : memref<8x128xf32, #tpu.memory_space<vmem>>, vector<1x128xf32>
    %c0_40 = arith.constant 0 : index
    %c3_41 = arith.constant 3 : index
    %c0_42 = arith.constant 0 : index
    %c0_43 = arith.constant 0 : index
    %29 = vector.load %arg6[%c0_40, %c3_41, %c0_42, %c0_43] : memref<2x8x128x128xf32, #tpu.memory_space<vmem>>, vector<1x1x128x128xf32>
    %30 = vector.shape_cast %29 : vector<1x1x128x128xf32> to vector<128x128xf32>
    %cst_44 = arith.constant dense<0.000000e+00> : vector<1x128xf32>
    %31 = tpu.matmul %28, %30, %cst_44 {dimension_numbers = #tpu.dot_dimension_numbers<[1], [1], [0], [0], [0, 0, 1, 0], [], []>} : vector<1x128xf32>, vector<128x128xf32>, vector<1x128xf32> -> vector<1x128xf32>
    %c3_45 = arith.constant 3 : index
    %c0_46 = arith.constant 0 : index
    %32 = vector.load %arg3[%c3_45, %c0_46] : memref<8x128xf32, #tpu.memory_space<vmem>>, vector<1x128xf32>
    %33 = arith.addf %31, %32 : vector<1x128xf32>
    %c3_47 = arith.constant 3 : index
    %c0_48 = arith.constant 0 : index
    %34 = vector.load %arg5[%c3_47, %c0_48] : memref<8x128xf32, #tpu.memory_space<vmem>>, vector<1x128xf32>
    tpu.vector_store %arg5[%c3_47, %c0_48], %33 {strides = array<i32>} : memref<8x128xf32, #tpu.memory_space<vmem>>, vector<1x128xf32>,
    %c4 = arith.constant 4 : index
    %c0_49 = arith.constant 0 : index
    %35 = vector.load %arg2[%c4, %c0_49] : memref<8x128xf32, #tpu.memory_space<vmem>>, vector<1x128xf32>
    %c0_50 = arith.constant 0 : index
    %c4_51 = arith.constant 4 : index
    %c0_52 = arith.constant 0 : index
    %c0_53 = arith.constant 0 : index
    %36 = vector.load %arg6[%c0_50, %c4_51, %c0_52, %c0_53] : memref<2x8x128x128xf32, #tpu.memory_space<vmem>>, vector<1x1x128x128xf32>
    %37 = vector.shape_cast %36 : vector<1x1x128x128xf32> to vector<128x128xf32>
    %cst_54 = arith.constant dense<0.000000e+00> : vector<1x128xf32>
    %38 = tpu.matmul %35, %37, %cst_54 {dimension_numbers = #tpu.dot_dimension_numbers<[1], [1], [0], [0], [0, 0, 1, 0], [], []>} : vector<1x128xf32>, vector<128x128xf32>, vector<1x128xf32> -> vector<1x128xf32>
    %c4_55 = arith.constant 4 : index
    %c0_56 = arith.constant 0 : index
    %39 = vector.load %arg3[%c4_55, %c0_56] : memref<8x128xf32, #tpu.memory_space<vmem>>, vector<1x128xf32>
    %40 = arith.addf %38, %39 : vector<1x128xf32>
    %c4_57 = arith.constant 4 : index
    %c0_58 = arith.constant 0 : index
    %41 = vector.load %arg5[%c4_57, %c0_58] : memref<8x128xf32, #tpu.memory_space<vmem>>, vector<1x128xf32>
    tpu.vector_store %arg5[%c4_57, %c0_58], %40 {strides = array<i32>} : memref<8x128xf32, #tpu.memory_space<vmem>>, vector<1x128xf32>,
    %c5 = arith.constant 5 : index
    %c0_59 = arith.constant 0 : index
    %42 = vector.load %arg2[%c5, %c0_59] : memref<8x128xf32, #tpu.memory_space<vmem>>, vector<1x128xf32>
    %c0_60 = arith.constant 0 : index
    %c5_61 = arith.constant 5 : index
    %c0_62 = arith.constant 0 : index
    %c0_63 = arith.constant 0 : index
    %43 = vector.load %arg6[%c0_60, %c5_61, %c0_62, %c0_63] : memref<2x8x128x128xf32, #tpu.memory_space<vmem>>, vector<1x1x128x128xf32>
    %44 = vector.shape_cast %43 : vector<1x1x128x128xf32> to vector<128x128xf32>
    %cst_64 = arith.constant dense<0.000000e+00> : vector<1x128xf32>
    %45 = tpu.matmul %42, %44, %cst_64 {dimension_numbers = #tpu.dot_dimension_numbers<[1], [1], [0], [0], [0, 0, 1, 0], [], []>} : vector<1x128xf32>, vector<128x128xf32>, vector<1x128xf32> -> vector<1x128xf32>
    %c5_65 = arith.constant 5 : index
    %c0_66 = arith.constant 0 : index
    %46 = vector.load %arg3[%c5_65, %c0_66] : memref<8x128xf32, #tpu.memory_space<vmem>>, vector<1x128xf32>
    %47 = arith.addf %45, %46 : vector<1x128xf32>
    %c5_67 = arith.constant 5 : index
    %c0_68 = arith.constant 0 : index
    %48 = vector.load %arg5[%c5_67, %c0_68] : memref<8x128xf32, #tpu.memory_space<vmem>>, vector<1x128xf32>
    tpu.vector_store %arg5[%c5_67, %c0_68], %47 {strides = array<i32>} : memref<8x128xf32, #tpu.memory_space<vmem>>, vector<1x128xf32>,
    %c6 = arith.constant 6 : index
    %c0_69 = arith.constant 0 : index
    %49 = vector.load %arg2[%c6, %c0_69] : memref<8x128xf32, #tpu.memory_space<vmem>>, vector<1x128xf32>
    %c0_70 = arith.constant 0 : index
    %c6_71 = arith.constant 6 : index
    %c0_72 = arith.constant 0 : index
    %c0_73 = arith.constant 0 : index
    %50 = vector.load %arg6[%c0_70, %c6_71, %c0_72, %c0_73] : memref<2x8x128x128xf32, #tpu.memory_space<vmem>>, vector<1x1x128x128xf32>
    %51 = vector.shape_cast %50 : vector<1x1x128x128xf32> to vector<128x128xf32>
    %cst_74 = arith.constant dense<0.000000e+00> : vector<1x128xf32>
    %52 = tpu.matmul %49, %51, %cst_74 {dimension_numbers = #tpu.dot_dimension_numbers<[1], [1], [0], [0], [0, 0, 1, 0], [], []>} : vector<1x128xf32>, vector<128x128xf32>, vector<1x128xf32> -> vector<1x128xf32>
    %c6_75 = arith.constant 6 : index
    %c0_76 = arith.constant 0 : index
    %53 = vector.load %arg3[%c6_75, %c0_76] : memref<8x128xf32, #tpu.memory_space<vmem>>, vector<1x128xf32>
    %54 = arith.addf %52, %53 : vector<1x128xf32>
    %c6_77 = arith.constant 6 : index
    %c0_78 = arith.constant 0 : index
    %55 = vector.load %arg5[%c6_77, %c0_78] : memref<8x128xf32, #tpu.memory_space<vmem>>, vector<1x128xf32>
    tpu.vector_store %arg5[%c6_77, %c0_78], %54 {strides = array<i32>} : memref<8x128xf32, #tpu.memory_space<vmem>>, vector<1x128xf32>,
    %c7 = arith.constant 7 : index
    %c0_79 = arith.constant 0 : index
    %56 = vector.load %arg2[%c7, %c0_79] : memref<8x128xf32, #tpu.memory_space<vmem>>, vector<1x128xf32>
    %c0_80 = arith.constant 0 : index
    %c7_81 = arith.constant 7 : index
    %c0_82 = arith.constant 0 : index
    %c0_83 = arith.constant 0 : index
    %57 = vector.load %arg6[%c0_80, %c7_81, %c0_82, %c0_83] : memref<2x8x128x128xf32, #tpu.memory_space<vmem>>, vector<1x1x128x128xf32>
    %58 = vector.shape_cast %57 : vector<1x1x128x128xf32> to vector<128x128xf32>
    %cst_84 = arith.constant dense<0.000000e+00> : vector<1x128xf32>
    %59 = tpu.matmul %56, %58, %cst_84 {dimension_numbers = #tpu.dot_dimension_numbers<[1], [1], [0], [0], [0, 0, 1, 0], [], []>} : vector<1x128xf32>, vector<128x128xf32>, vector<1x128xf32> -> vector<1x128xf32>
    %c7_85 = arith.constant 7 : index
    %c0_86 = arith.constant 0 : index
    %60 = vector.load %arg3[%c7_85, %c0_86] : memref<8x128xf32, #tpu.memory_space<vmem>>, vector<1x128xf32>
    %61 = arith.addf %59, %60 : vector<1x128xf32>
    %c7_87 = arith.constant 7 : index
    %c0_88 = arith.constant 0 : index
    %62 = vector.load %arg5[%c7_87, %c0_88] : memref<8x128xf32, #tpu.memory_space<vmem>>, vector<1x128xf32>
    tpu.vector_store %arg5[%c7_87, %c0_88], %61 {strides = array<i32>} : memref<8x128xf32, #tpu.memory_space<vmem>>, vector<1x128xf32>,
    return
  }
  func.func @transform_0(%arg0: i32, %arg1: memref<8x128xi32, #tpu.memory_space<smem>>) -> (i32, i32) {
    %c0_i32 = arith.constant 0 : i32
    %c0_i32_0 = arith.constant 0 : i32
    return %arg0, %c0_i32 : i32, i32
  }
  func.func @transform_1(%arg0: i32, %arg1: memref<8x128xi32, #tpu.memory_space<smem>>) -> (i32, i32) {
    %c0_i32 = arith.constant 0 : i32
    %c0_i32_0 = arith.constant 0 : i32
    return %arg0, %c0_i32 : i32, i32
  }
  func.func @transform_2(%arg0: i32, %arg1: memref<8x128xi32, #tpu.memory_space<smem>>) -> (i32, i32) {
    %c0_i32 = arith.constant 0 : i32
    %c0_i32_0 = arith.constant 0 : i32
    %c0_i32_1 = arith.constant 0 : i32
    return %c0_i32, %c0_i32_0 : i32, i32
  }
  func.func @transform_3(%arg0: i32, %arg1: memref<8x128xi32, #tpu.memory_space<smem>>) -> (i32, i32) {
    %c0_i32 = arith.constant 0 : i32
    %c0_i32_0 = arith.constant 0 : i32
    return %arg0, %c0_i32 : i32, i32
  }
}

</mosaic_0001>

<llo_original>
// kernel: tpu_custom_call.1
$region0: #{tpu_custom_call.1}
  #allocation0 [shape = 'u32[]', space=smem, size = 0x4, offset = 0x4, fixed_abs, tag = 'smem constant byte address 0x4 - core index']
  #allocation1 [shape = 'u32[72,128]{1,0:T(1,128)}', space=vmem, size = 0x9000, scoped, tag = 'internal scratch']
  #allocation2 [shape = 'f32[2,8,128,128]{3,2,1,0:T(8,128)}', space=vmem, size = 0x100000, scoped, tag = 'scratch operand']
  #allocation3 [shape = 's32[2]{0}', space=sflag, size = 0x8, scoped, tag = 'scratch operand']
  #allocation4 [shape = 's32[1]{0}', space=sflag, size = 0x4, scoped, tag = 'scoped memory for tpu_custom_call.1']
  #allocation5 [shape = 'u8[4096]{0}', space=smem, size = 0x1000, scoped, tag = 'prefetched SMEM operand 0']
  #allocation13 [shape = 's32[]', space=sflag, size = 0x4, offset = 0, fixed_abs, tag = 'sflag constant byte address 0x0 - dummy sync flag']
  #allocation14 [shape = 's32[]', space=sflag, size = 0x4, offset = 0, fixed_abs, tag = 'sflag constant byte address 0x0 - dummy sync flag']
  #allocation15 [shape = 's32[]', space=sflag, size = 0x4, offset = 0, fixed_abs, tag = 'sflag constant byte address 0x0 - dummy sync flag']
  #allocation16 [shape = 's32[]', space=sflag, size = 0x4, offset = 0, fixed_abs, tag = 'sflag constant byte address 0x0 - dummy sync flag']
  #allocation17 [shape = 's32[]', space=sflag, size = 0x4, offset = 0, fixed_abs, tag = 'sflag constant byte address 0x0 - dummy sync flag']
  #allocation18 [shape = 's32[]', space=sflag, size = 0x4, offset = 0, fixed_abs, tag = 'sflag constant byte address 0x0 - dummy sync flag']
  #allocation19 [shape = 's32[]', space=sflag, size = 0x4, offset = 0, fixed_abs, tag = 'sflag constant byte address 0x0 - dummy sync flag']
  #allocation20 [shape = 's32[]', space=sflag, size = 0x4, offset = 0, fixed_abs, tag = 'sflag constant byte address 0x0 - dummy sync flag']
  %s0 = inlined_call_operand.hbm [shape: s32[8,128], index: 0, kind: input, shape index: {}]
  %s1 = inlined_call_operand.hbm [shape: f32[8,128], index: 1, kind: input, shape index: {}]
  %s2 = inlined_call_operand.hbm [shape: f32[8,128], index: 2, kind: input, shape index: {}]
  %s3 = inlined_call_operand.hbm [shape: f32[64,128], index: 3, kind: input, shape index: {}]
  %s4 = inlined_call_operand.hbm [shape: f32[8,128], index: 4, kind: output, shape index: {}]
  %s5 = sld [smem:[#allocation0]]
  $region281: #{tpu_custom_call.1} parent=0
    _
  %s7 = ssub.s32 1, %s5
  %s8 = scalar_select 0, %s7, %s5
  %s10 = sshll.u32 %s0, 4
  %s11 = int_to_ptr.hbm [resolvable:$true] %s10
  %13 = dma.hbm_to_smem %s11, 128, [#allocation5], [#allocation4]
  %15 = dma.done [#allocation4], 128
  %16 = sfence
  $region1: #{tpu_custom_call.1} parent=0
    #allocation6 [shape = 'u8[4096]{0}', space=vmem, size = 0x1000, scoped, tag = 'input window, operand 1, single buffered']
    #allocation7 [shape = 's32[1]{0}', space=sflag, size = 0x4, scoped, tag = 'scoped memory for tpu_custom_call.1']
    #allocation8 [shape = 's32[1]{0}', space=sflag, size = 0x4, scoped, tag = 'scoped memory for tpu_custom_call.1']
    #allocation9 [shape = 'u8[4096]{0}', space=vmem, size = 0x1000, scoped, tag = 'input window, operand 2, single buffered']
    #allocation10 [shape = 's32[1]{0}', space=sflag, size = 0x4, scoped, tag = 'scoped memory for tpu_custom_call.1']
    #allocation11 [shape = 'u8[32768]{0}', space=vmem, size = 0x8000, scoped, tag = 'input window, operand 3, single buffered']
    #allocation12 [shape = 'u8[4096]{0}', space=vmem, size = 0x1000, scoped, tag = 'output window, operand 0, single buffered']
    %17 = vsyncpa [#allocation7], 0
    %18 = vsyncpa [#allocation10], 0
    %19 = vsyncpa [#allocation8], 0
    // Predicated region
    $region2: #{tpu_custom_call.1} parent=1 // pred_check
      _
    $region3: #{tpu_custom_call.1} parent=1 // pred_check_branch
      %21 = sbr.rel (0) target = $region5
    $region4: #{tpu_custom_call.1} parent=1 // pred_region
      %23 = vsyncadd [#allocation7], 0
      %s25 = sshll.u32 %s1, 4
      %s26 = int_to_ptr.hbm [resolvable:$true] %s25
      %s27 = sshll.u32 [#allocation6], 4
      %s28 = int_to_ptr.vmem [resolvable:$true] %s27
      %30 = dma.hbm_to_vmem [thread:$0]  %s26, 128, %s28, [#allocation7]
    $region5: #{tpu_custom_call.1} parent=1 // pred_fallthru
      _
    // Predicated region
    $region6: #{tpu_custom_call.1} parent=1 // pred_check
      _
    $region7: #{tpu_custom_call.1} parent=1 // pred_check_branch
      %32 = sbr.rel (0) target = $region9
    $region8: #{tpu_custom_call.1} parent=1 // pred_region
      %34 = vsyncadd [#allocation10], 0
      %s36 = sshll.u32 %s2, 4
      %s37 = int_to_ptr.hbm [resolvable:$true] %s36
      %s38 = sshll.u32 [#allocation9], 4
      %s39 = int_to_ptr.vmem [resolvable:$true] %s38
      %41 = dma.hbm_to_vmem [thread:$0]  %s37, 128, %s39, [#allocation10]
    $region9: #{tpu_custom_call.1} parent=1 // pred_fallthru
      _
    // Predicated region
    $region10: #{tpu_custom_call.1} parent=1 // pred_check
      _
    $region11: #{tpu_custom_call.1} parent=1 // pred_check_branch
      %43 = sbr.rel (0) target = $region13
    $region12: #{tpu_custom_call.1} parent=1 // pred_region
      %45 = vsyncadd [#allocation10], 0
      %s46 = sshll.u32 %s3, 4
      %s47 = int_to_ptr.hbm [resolvable:$true] %s46
      %s48 = sshll.u32 [#allocation11], 4
      %s49 = int_to_ptr.vmem [resolvable:$true] %s48
      %54 = dma.hbm_to_vmem [thread:$0]  %s47, 1024, %s49, [#allocation10], 128, 128, 8
    $region13: #{tpu_custom_call.1} parent=1 // pred_fallthru
      _
    // Predicated region
    $region14: #{tpu_custom_call.1} parent=1 // pred_check
      _
    $region15: #{tpu_custom_call.1} parent=1 // pred_check_branch
      %56 = sbr.rel (0) target = $region17
    $region16: #{tpu_custom_call.1} parent=1 // pred_region
      %58 = dma.done [#allocation7], 128
    $region17: #{tpu_custom_call.1} parent=1 // pred_fallthru
      _
    // Predicated region
    $region18: #{tpu_custom_call.1} parent=1 // pred_check
      _
    $region19: #{tpu_custom_call.1} parent=1 // pred_check_branch
      %60 = sbr.rel (0) target = $region21
    $region20: #{tpu_custom_call.1} parent=1 // pred_region
      %62 = dma.done [#allocation10], 128
    $region21: #{tpu_custom_call.1} parent=1 // pred_fallthru
      _
    // Predicated region
    $region22: #{tpu_custom_call.1} parent=1 // pred_check
      _
    $region23: #{tpu_custom_call.1} parent=1 // pred_check_branch
      %64 = sbr.rel (0) target = $region25
    $region24: #{tpu_custom_call.1} parent=1 // pred_region
      %66 = dma.done [#allocation10], 1024
    $region25: #{tpu_custom_call.1} parent=1 // pred_fallthru
      _
    loop: start=0, step=1, limit=128
    $region26: #{tpu_custom_call.1} parent=1 // loop_pre_header
      _
    $region27: #{tpu_custom_call.1} parent=1 // loop_header
      %s68 = sphi 0, %s72
      %p69 = scmp.ge.s32.totalorder %s68, 128
    $region28: #{tpu_custom_call.1} parent=1 // loop_header_branch
      %71 = sbr.rel (%p69) target = $region32
    $region29: #{tpu_custom_call.1} parent=1 // loop_body
      %s73 = smul.u32 0, 8
      %s74 = sshra.s32 %s68, 7
      %s75 = sand.u32 %s68, 127
      %s76 = sadd.s32 %s74, %s73
      %s77 = smul.u32 %s76, 128
      %s78 = sshra.s32 %s68, 7
      %s79 = sand.u32 %s68, 127
      %s80 = sadd.s32 %s77, %s79
      %s81 = sld [smem:[#allocation5 + %s80]]
      %s82 = scalar_lea.vmem [#allocation11], %s81
      %s83 = scalar_lea.vmem [#allocation2], %s68
      // Predicated region
      $region33: #{tpu_custom_call.1} parent=29 // pred_check
        _
      $region34: #{tpu_custom_call.1} parent=29 // pred_check_branch
        %85 = sbr.rel target = $region36
      $region35: #{tpu_custom_call.1} parent=29 // pred_region
        // Predicated region
        $region48: #{tpu_custom_call.1} parent=35 // pred_check
          _
        $region49: #{tpu_custom_call.1} parent=35 // pred_check_branch
          %101 = sbr.rel (0) target = $region51
        $region50: #{tpu_custom_call.1} parent=35 // pred_region
          %s103 = ssub.s32 2, 1
          loop: start=0, step=1, limit=1
          $region52: #{tpu_custom_call.1} parent=50 // loop_pre_header
            _
          $region53: #{tpu_custom_call.1} parent=50 // loop_header
            %s105 = sphi 0, %s109
            %p106 = scmp.ge.s32.totalorder %s105, 1
            %s110 = sphi %s82, %s82
            %s111 = sphi %s83, %s83
          $region54: #{tpu_custom_call.1} parent=50 // loop_header_branch
            %108 = sbr.rel (%p106) target = $region58
          $region55: #{tpu_custom_call.1} parent=50 // loop_body
            %v112 = vld [vmem:[%s110] sm:%s103]
            %113 = vst [vmem:[%s111] sm:%s103] %v112
          $region56: #{tpu_custom_call.1} parent=50 // loop_footer
            %s109 = sadd.s32 1, %s105
          $region57: #{tpu_custom_call.1} parent=50 // loop_footer_branch
            %104 = sbr.rel target = $region53
          $region58: #{tpu_custom_call.1} parent=50 // loop_exit
            _
        $region51: #{tpu_custom_call.1} parent=35 // pred_fallthru
          _
      $region36: #{tpu_custom_call.1} parent=29 // pred_fallthru
        _
      // Predicated region
      $region37: #{tpu_custom_call.1} parent=29 // pred_check
        _
      $region38: #{tpu_custom_call.1} parent=29 // pred_check_branch
        %87 = sbr.rel (0) target = $region40
      $region39: #{tpu_custom_call.1} parent=29 // pred_region
        %s89 = ssub.s32 2, 1
        loop: start=0, step=1, limit=1
        $region41: #{tpu_custom_call.1} parent=39 // loop_pre_header
          _
        $region42: #{tpu_custom_call.1} parent=39 // loop_header
          %s91 = sphi 0, %s95
          %p92 = scmp.ge.s32.totalorder %s91, 1
          %s96 = sphi %s82, %s82
          %s97 = sphi %s83, %s83
        $region43: #{tpu_custom_call.1} parent=39 // loop_header_branch
          %94 = sbr.rel (%p92) target = $region47
        $region44: #{tpu_custom_call.1} parent=39 // loop_body
          %v98 = vld [vmem:[%s96] sm:%s89]
          %99 = vst [vmem:[%s97] sm:%s89] %v98
        $region45: #{tpu_custom_call.1} parent=39 // loop_footer
          %s95 = sadd.s32 1, %s91
        $region46: #{tpu_custom_call.1} parent=39 // loop_footer_branch
          %90 = sbr.rel target = $region42
        $region47: #{tpu_custom_call.1} parent=39 // loop_exit
          _
      $region40: #{tpu_custom_call.1} parent=29 // pred_fallthru
        _
      // Predicated region
      $region59: #{tpu_custom_call.1} parent=29 // pred_check
        _
      $region60: #{tpu_custom_call.1} parent=29 // pred_check_branch
        %116 = sbr.rel (0) target = $region62
      $region61: #{tpu_custom_call.1} parent=29 // pred_region
        %117 = vsyncadd [#allocation3], 16
      $region62: #{tpu_custom_call.1} parent=29 // pred_fallthru
        _
      %s118 = sadd.s32 %s73, 1
      %s119 = sadd.s32 %s74, %s118
      %s120 = smul.u32 %s119, 128
      %s121 = sadd.s32 %s120, %s79
      %s122 = sld [smem:[#allocation5 + %s121]]
      %s123 = scalar_lea.vmem [#allocation11], %s122
      %s124 = sadd.s32 %s68, 128
      %s125 = scalar_lea.vmem [#allocation2], %s124
      // Predicated region
      $region63: #{tpu_custom_call.1} parent=29 // pred_check
        _
      $region64: #{tpu_custom_call.1} parent=29 // pred_check_branch
        %127 = sbr.rel target = $region66
      $region65: #{tpu_custom_call.1} parent=29 // pred_region
        // Predicated region
        $region78: #{tpu_custom_call.1} parent=65 // pred_check
          _
        $region79: #{tpu_custom_call.1} parent=65 // pred_check_branch
          %143 = sbr.rel (0) target = $region81
        $region80: #{tpu_custom_call.1} parent=65 // pred_region
          %s145 = ssub.s32 2, 1
          loop: start=0, step=1, limit=1
          $region82: #{tpu_custom_call.1} parent=80 // loop_pre_header
            _
          $region83: #{tpu_custom_call.1} parent=80 // loop_header
            %s147 = sphi 0, %s151
            %p148 = scmp.ge.s32.totalorder %s147, 1
            %s152 = sphi %s123, %s123
            %s153 = sphi %s125, %s125
          $region84: #{tpu_custom_call.1} parent=80 // loop_header_branch
            %150 = sbr.rel (%p148) target = $region88
          $region85: #{tpu_custom_call.1} parent=80 // loop_body
            %v154 = vld [vmem:[%s152] sm:%s145]
            %155 = vst [vmem:[%s153] sm:%s145] %v154
          $region86: #{tpu_custom_call.1} parent=80 // loop_footer
            %s151 = sadd.s32 1, %s147
          $region87: #{tpu_custom_call.1} parent=80 // loop_footer_branch
            %146 = sbr.rel target = $region83
          $region88: #{tpu_custom_call.1} parent=80 // loop_exit
            _
        $region81: #{tpu_custom_call.1} parent=65 // pred_fallthru
          _
      $region66: #{tpu_custom_call.1} parent=29 // pred_fallthru
        _
      // Predicated region
      $region67: #{tpu_custom_call.1} parent=29 // pred_check
        _
      $region68: #{tpu_custom_call.1} parent=29 // pred_check_branch
        %129 = sbr.rel (0) target = $region70
      $region69: #{tpu_custom_call.1} parent=29 // pred_region
        %s131 = ssub.s32 2, 1
        loop: start=0, step=1, limit=1
        $region71: #{tpu_custom_call.1} parent=69 // loop_pre_header
          _
        $region72: #{tpu_custom_call.1} parent=69 // loop_header
          %s133 = sphi 0, %s137
          %p134 = scmp.ge.s32.totalorder %s133, 1
          %s138 = sphi %s123, %s123
          %s139 = sphi %s125, %s125
        $region73: #{tpu_custom_call.1} parent=69 // loop_header_branch
          %136 = sbr.rel (%p134) target = $region77
        $region74: #{tpu_custom_call.1} parent=69 // loop_body
          %v140 = vld [vmem:[%s138] sm:%s131]
          %141 = vst [vmem:[%s139] sm:%s131] %v140
        $region75: #{tpu_custom_call.1} parent=69 // loop_footer
          %s137 = sadd.s32 1, %s133
        $region76: #{tpu_custom_call.1} parent=69 // loop_footer_branch
          %132 = sbr.rel target = $region72
        $region77: #{tpu_custom_call.1} parent=69 // loop_exit
          _
      $region70: #{tpu_custom_call.1} parent=29 // pred_fallthru
        _
      // Predicated region
      $region89: #{tpu_custom_call.1} parent=29 // pred_check
        _
      $region90: #{tpu_custom_call.1} parent=29 // pred_check_branch
        %158 = sbr.rel (0) target = $region92
      $region91: #{tpu_custom_call.1} parent=29 // pred_region
        %159 = vsyncadd [#allocation3], 16
      $region92: #{tpu_custom_call.1} parent=29 // pred_fallthru
        _
      %s160 = sadd.s32 %s73, 2
      %s161 = sadd.s32 %s74, %s160
      %s162 = smul.u32 %s161, 128
      %s163 = sadd.s32 %s162, %s79
      %s164 = sld [smem:[#allocation5 + %s163]]
      %s165 = scalar_lea.vmem [#allocation11], %s164
      %s166 = sadd.s32 %s68, 256
      %s167 = scalar_lea.vmem [#allocation2], %s166
      // Predicated region
      $region93: #{tpu_custom_call.1} parent=29 // pred_check
        _
      $region94: #{tpu_custom_call.1} parent=29 // pred_check_branch
        %169 = sbr.rel target = $region96
      $region95: #{tpu_custom_call.1} parent=29 // pred_region
        // Predicated region
        $region108: #{tpu_custom_call.1} parent=95 // pred_check
          _
        $region109: #{tpu_custom_call.1} parent=95 // pred_check_branch
          %185 = sbr.rel (0) target = $region111
        $region110: #{tpu_custom_call.1} parent=95 // pred_region
          %s187 = ssub.s32 2, 1
          loop: start=0, step=1, limit=1
          $region112: #{tpu_custom_call.1} parent=110 // loop_pre_header
            _
          $region113: #{tpu_custom_call.1} parent=110 // loop_header
            %s189 = sphi 0, %s193
            %p190 = scmp.ge.s32.totalorder %s189, 1
            %s194 = sphi %s165, %s165
            %s195 = sphi %s167, %s167
          $region114: #{tpu_custom_call.1} parent=110 // loop_header_branch
            %192 = sbr.rel (%p190) target = $region118
          $region115: #{tpu_custom_call.1} parent=110 // loop_body
            %v196 = vld [vmem:[%s194] sm:%s187]
            %197 = vst [vmem:[%s195] sm:%s187] %v196
          $region116: #{tpu_custom_call.1} parent=110 // loop_footer
            %s193 = sadd.s32 1, %s189
          $region117: #{tpu_custom_call.1} parent=110 // loop_footer_branch
            %188 = sbr.rel target = $region113
          $region118: #{tpu_custom_call.1} parent=110 // loop_exit
            _
        $region111: #{tpu_custom_call.1} parent=95 // pred_fallthru
          _
      $region96: #{tpu_custom_call.1} parent=29 // pred_fallthru
        _
      // Predicated region
      $region97: #{tpu_custom_call.1} parent=29 // pred_check
        _
      $region98: #{tpu_custom_call.1} parent=29 // pred_check_branch
        %171 = sbr.rel (0) target = $region100
      $region99: #{tpu_custom_call.1} parent=29 // pred_region
        %s173 = ssub.s32 2, 1
        loop: start=0, step=1, limit=1
        $region101: #{tpu_custom_call.1} parent=99 // loop_pre_header
          _
        $region102: #{tpu_custom_call.1} parent=99 // loop_header
          %s175 = sphi 0, %s179
          %p176 = scmp.ge.s32.totalorder %s175, 1
          %s180 = sphi %s165, %s165
          %s181 = sphi %s167, %s167
        $region103: #{tpu_custom_call.1} parent=99 // loop_header_branch
          %178 = sbr.rel (%p176) target = $region107
        $region104: #{tpu_custom_call.1} parent=99 // loop_body
          %v182 = vld [vmem:[%s180] sm:%s173]
          %183 = vst [vmem:[%s181] sm:%s173] %v182
        $region105: #{tpu_custom_call.1} parent=99 // loop_footer
          %s179 = sadd.s32 1, %s175
        $region106: #{tpu_custom_call.1} parent=99 // loop_footer_branch
          %174 = sbr.rel target = $region102
        $region107: #{tpu_custom_call.1} parent=99 // loop_exit
          _
      $region100: #{tpu_custom_call.1} parent=29 // pred_fallthru
        _
      // Predicated region
      $region119: #{tpu_custom_call.1} parent=29 // pred_check
        _
      $region120: #{tpu_custom_call.1} parent=29 // pred_check_branch
        %200 = sbr.rel (0) target = $region122
      $region121: #{tpu_custom_call.1} parent=29 // pred_region
        %201 = vsyncadd [#allocation3], 16
      $region122: #{tpu_custom_call.1} parent=29 // pred_fallthru
        _
      %s202 = sadd.s32 %s73, 3
      %s203 = sadd.s32 %s74, %s202
      %s204 = smul.u32 %s203, 128
      %s205 = sadd.s32 %s204, %s79
      %s206 = sld [smem:[#allocation5 + %s205]]
      %s207 = scalar_lea.vmem [#allocation11], %s206
      %s208 = sadd.s32 %s68, 384
      %s209 = scalar_lea.vmem [#allocation2], %s208
      // Predicated region
      $region123: #{tpu_custom_call.1} parent=29 // pred_check
        _
      $region124: #{tpu_custom_call.1} parent=29 // pred_check_branch
        %211 = sbr.rel target = $region126
      $region125: #{tpu_custom_call.1} parent=29 // pred_region
        // Predicated region
        $region138: #{tpu_custom_call.1} parent=125 // pred_check
          _
        $region139: #{tpu_custom_call.1} parent=125 // pred_check_branch
          %227 = sbr.rel (0) target = $region141
        $region140: #{tpu_custom_call.1} parent=125 // pred_region
          %s229 = ssub.s32 2, 1
          loop: start=0, step=1, limit=1
          $region142: #{tpu_custom_call.1} parent=140 // loop_pre_header
            _
          $region143: #{tpu_custom_call.1} parent=140 // loop_header
            %s231 = sphi 0, %s235
            %p232 = scmp.ge.s32.totalorder %s231, 1
            %s236 = sphi %s207, %s207
            %s237 = sphi %s209, %s209
          $region144: #{tpu_custom_call.1} parent=140 // loop_header_branch
            %234 = sbr.rel (%p232) target = $region148
          $region145: #{tpu_custom_call.1} parent=140 // loop_body
            %v238 = vld [vmem:[%s236] sm:%s229]
            %239 = vst [vmem:[%s237] sm:%s229] %v238
          $region146: #{tpu_custom_call.1} parent=140 // loop_footer
            %s235 = sadd.s32 1, %s231
          $region147: #{tpu_custom_call.1} parent=140 // loop_footer_branch
            %230 = sbr.rel target = $region143
          $region148: #{tpu_custom_call.1} parent=140 // loop_exit
            _
        $region141: #{tpu_custom_call.1} parent=125 // pred_fallthru
          _
      $region126: #{tpu_custom_call.1} parent=29 // pred_fallthru
        _
      // Predicated region
      $region127: #{tpu_custom_call.1} parent=29 // pred_check
        _
      $region128: #{tpu_custom_call.1} parent=29 // pred_check_branch
        %213 = sbr.rel (0) target = $region130
      $region129: #{tpu_custom_call.1} parent=29 // pred_region
        %s215 = ssub.s32 2, 1
        loop: start=0, step=1, limit=1
        $region131: #{tpu_custom_call.1} parent=129 // loop_pre_header
          _
        $region132: #{tpu_custom_call.1} parent=129 // loop_header
          %s217 = sphi 0, %s221
          %p218 = scmp.ge.s32.totalorder %s217, 1
          %s222 = sphi %s207, %s207
          %s223 = sphi %s209, %s209
        $region133: #{tpu_custom_call.1} parent=129 // loop_header_branch
          %220 = sbr.rel (%p218) target = $region137
        $region134: #{tpu_custom_call.1} parent=129 // loop_body
          %v224 = vld [vmem:[%s222] sm:%s215]
          %225 = vst [vmem:[%s223] sm:%s215] %v224
        $region135: #{tpu_custom_call.1} parent=129 // loop_footer
          %s221 = sadd.s32 1, %s217
        $region136: #{tpu_custom_call.1} parent=129 // loop_footer_branch
          %216 = sbr.rel target = $region132
        $region137: #{tpu_custom_call.1} parent=129 // loop_exit
          _
      $region130: #{tpu_custom_call.1} parent=29 // pred_fallthru
        _
      // Predicated region
      $region149: #{tpu_custom_call.1} parent=29 // pred_check
        _
      $region150: #{tpu_custom_call.1} parent=29 // pred_check_branch
        %242 = sbr.rel (0) target = $region152
      $region151: #{tpu_custom_call.1} parent=29 // pred_region
        %243 = vsyncadd [#allocation3], 16
      $region152: #{tpu_custom_call.1} parent=29 // pred_fallthru
        _
      %s244 = sadd.s32 %s73, 4
      %s245 = sadd.s32 %s74, %s244
      %s246 = smul.u32 %s245, 128
      %s247 = sadd.s32 %s246, %s79
      %s248 = sld [smem:[#allocation5 + %s247]]
      %s249 = scalar_lea.vmem [#allocation11], %s248
      %s250 = sadd.s32 %s68, 512
      %s251 = scalar_lea.vmem [#allocation2], %s250
      // Predicated region
      $region153: #{tpu_custom_call.1} parent=29 // pred_check
        _
      $region154: #{tpu_custom_call.1} parent=29 // pred_check_branch
        %253 = sbr.rel target = $region156
      $region155: #{tpu_custom_call.1} parent=29 // pred_region
        // Predicated region
        $region168: #{tpu_custom_call.1} parent=155 // pred_check
          _
        $region169: #{tpu_custom_call.1} parent=155 // pred_check_branch
          %269 = sbr.rel (0) target = $region171
        $region170: #{tpu_custom_call.1} parent=155 // pred_region
          %s271 = ssub.s32 2, 1
          loop: start=0, step=1, limit=1
          $region172: #{tpu_custom_call.1} parent=170 // loop_pre_header
            _
          $region173: #{tpu_custom_call.1} parent=170 // loop_header
            %s273 = sphi 0, %s277
            %p274 = scmp.ge.s32.totalorder %s273, 1
            %s278 = sphi %s249, %s249
            %s279 = sphi %s251, %s251
          $region174: #{tpu_custom_call.1} parent=170 // loop_header_branch
            %276 = sbr.rel (%p274) target = $region178
          $region175: #{tpu_custom_call.1} parent=170 // loop_body
            %v280 = vld [vmem:[%s278] sm:%s271]
            %281 = vst [vmem:[%s279] sm:%s271] %v280
          $region176: #{tpu_custom_call.1} parent=170 // loop_footer
            %s277 = sadd.s32 1, %s273
          $region177: #{tpu_custom_call.1} parent=170 // loop_footer_branch
            %272 = sbr.rel target = $region173
          $region178: #{tpu_custom_call.1} parent=170 // loop_exit
            _
        $region171: #{tpu_custom_call.1} parent=155 // pred_fallthru
          _
      $region156: #{tpu_custom_call.1} parent=29 // pred_fallthru
        _
      // Predicated region
      $region157: #{tpu_custom_call.1} parent=29 // pred_check
        _
      $region158: #{tpu_custom_call.1} parent=29 // pred_check_branch
        %255 = sbr.rel (0) target = $region160
      $region159: #{tpu_custom_call.1} parent=29 // pred_region
        %s257 = ssub.s32 2, 1
        loop: start=0, step=1, limit=1
        $region161: #{tpu_custom_call.1} parent=159 // loop_pre_header
          _
        $region162: #{tpu_custom_call.1} parent=159 // loop_header
          %s259 = sphi 0, %s263
          %p260 = scmp.ge.s32.totalorder %s259, 1
          %s264 = sphi %s249, %s249
          %s265 = sphi %s251, %s251
        $region163: #{tpu_custom_call.1} parent=159 // loop_header_branch
          %262 = sbr.rel (%p260) target = $region167
        $region164: #{tpu_custom_call.1} parent=159 // loop_body
          %v266 = vld [vmem:[%s264] sm:%s257]
          %267 = vst [vmem:[%s265] sm:%s257] %v266
        $region165: #{tpu_custom_call.1} parent=159 // loop_footer
          %s263 = sadd.s32 1, %s259
        $region166: #{tpu_custom_call.1} parent=159 // loop_footer_branch
          %258 = sbr.rel target = $region162
        $region167: #{tpu_custom_call.1} parent=159 // loop_exit
          _
      $region160: #{tpu_custom_call.1} parent=29 // pred_fallthru
        _
      // Predicated region
      $region179: #{tpu_custom_call.1} parent=29 // pred_check
        _
      $region180: #{tpu_custom_call.1} parent=29 // pred_check_branch
        %284 = sbr.rel (0) target = $region182
      $region181: #{tpu_custom_call.1} parent=29 // pred_region
        %285 = vsyncadd [#allocation3], 16
      $region182: #{tpu_custom_call.1} parent=29 // pred_fallthru
        _
      %s286 = sadd.s32 %s73, 5
      %s287 = sadd.s32 %s74, %s286
      %s288 = smul.u32 %s287, 128
      %s289 = sadd.s32 %s288, %s79
      %s290 = sld [smem:[#allocation5 + %s289]]
      %s291 = scalar_lea.vmem [#allocation11], %s290
      %s292 = sadd.s32 %s68, 640
      %s293 = scalar_lea.vmem [#allocation2], %s292
      // Predicated region
      $region183: #{tpu_custom_call.1} parent=29 // pred_check
        _
      $region184: #{tpu_custom_call.1} parent=29 // pred_check_branch
        %295 = sbr.rel target = $region186
      $region185: #{tpu_custom_call.1} parent=29 // pred_region
        // Predicated region
        $region198: #{tpu_custom_call.1} parent=185 // pred_check
          _
        $region199: #{tpu_custom_call.1} parent=185 // pred_check_branch
          %311 = sbr.rel (0) target = $region201
        $region200: #{tpu_custom_call.1} parent=185 // pred_region
          %s313 = ssub.s32 2, 1
          loop: start=0, step=1, limit=1
          $region202: #{tpu_custom_call.1} parent=200 // loop_pre_header
            _
          $region203: #{tpu_custom_call.1} parent=200 // loop_header
            %s315 = sphi 0, %s319
            %p316 = scmp.ge.s32.totalorder %s315, 1
            %s320 = sphi %s291, %s291
            %s321 = sphi %s293, %s293
          $region204: #{tpu_custom_call.1} parent=200 // loop_header_branch
            %318 = sbr.rel (%p316) target = $region208
          $region205: #{tpu_custom_call.1} parent=200 // loop_body
            %v322 = vld [vmem:[%s320] sm:%s313]
            %323 = vst [vmem:[%s321] sm:%s313] %v322
          $region206: #{tpu_custom_call.1} parent=200 // loop_footer
            %s319 = sadd.s32 1, %s315
          $region207: #{tpu_custom_call.1} parent=200 // loop_footer_branch
            %314 = sbr.rel target = $region203
          $region208: #{tpu_custom_call.1} parent=200 // loop_exit
            _
        $region201: #{tpu_custom_call.1} parent=185 // pred_fallthru
          _
      $region186: #{tpu_custom_call.1} parent=29 // pred_fallthru
        _
      // Predicated region
      $region187: #{tpu_custom_call.1} parent=29 // pred_check
        _
      $region188: #{tpu_custom_call.1} parent=29 // pred_check_branch
        %297 = sbr.rel (0) target = $region190
      $region189: #{tpu_custom_call.1} parent=29 // pred_region
        %s299 = ssub.s32 2, 1
        loop: start=0, step=1, limit=1
        $region191: #{tpu_custom_call.1} parent=189 // loop_pre_header
          _
        $region192: #{tpu_custom_call.1} parent=189 // loop_header
          %s301 = sphi 0, %s305
          %p302 = scmp.ge.s32.totalorder %s301, 1
          %s306 = sphi %s291, %s291
          %s307 = sphi %s293, %s293
        $region193: #{tpu_custom_call.1} parent=189 // loop_header_branch
          %304 = sbr.rel (%p302) target = $region197
        $region194: #{tpu_custom_call.1} parent=189 // loop_body
          %v308 = vld [vmem:[%s306] sm:%s299]
          %309 = vst [vmem:[%s307] sm:%s299] %v308
        $region195: #{tpu_custom_call.1} parent=189 // loop_footer
          %s305 = sadd.s32 1, %s301
        $region196: #{tpu_custom_call.1} parent=189 // loop_footer_branch
          %300 = sbr.rel target = $region192
        $region197: #{tpu_custom_call.1} parent=189 // loop_exit
          _
      $region190: #{tpu_custom_call.1} parent=29 // pred_fallthru
        _
      // Predicated region
      $region209: #{tpu_custom_call.1} parent=29 // pred_check
        _
      $region210: #{tpu_custom_call.1} parent=29 // pred_check_branch
        %326 = sbr.rel (0) target = $region212
      $region211: #{tpu_custom_call.1} parent=29 // pred_region
        %327 = vsyncadd [#allocation3], 16
      $region212: #{tpu_custom_call.1} parent=29 // pred_fallthru
        _
      %s328 = sadd.s32 %s73, 6
      %s329 = sadd.s32 %s74, %s328
      %s330 = smul.u32 %s329, 128
      %s331 = sadd.s32 %s330, %s79
      %s332 = sld [smem:[#allocation5 + %s331]]
      %s333 = scalar_lea.vmem [#allocation11], %s332
      %s334 = sadd.s32 %s68, 768
      %s335 = scalar_lea.vmem [#allocation2], %s334
      // Predicated region
      $region213: #{tpu_custom_call.1} parent=29 // pred_check
        _
      $region214: #{tpu_custom_call.1} parent=29 // pred_check_branch
        %337 = sbr.rel target = $region216
      $region215: #{tpu_custom_call.1} parent=29 // pred_region
        // Predicated region
        $region228: #{tpu_custom_call.1} parent=215 // pred_check
          _
        $region229: #{tpu_custom_call.1} parent=215 // pred_check_branch
          %353 = sbr.rel (0) target = $region231
        $region230: #{tpu_custom_call.1} parent=215 // pred_region
          %s355 = ssub.s32 2, 1
          loop: start=0, step=1, limit=1
          $region232: #{tpu_custom_call.1} parent=230 // loop_pre_header
            _
          $region233: #{tpu_custom_call.1} parent=230 // loop_header
            %s357 = sphi 0, %s361
            %p358 = scmp.ge.s32.totalorder %s357, 1
            %s362 = sphi %s333, %s333
            %s363 = sphi %s335, %s335
          $region234: #{tpu_custom_call.1} parent=230 // loop_header_branch
            %360 = sbr.rel (%p358) target = $region238
          $region235: #{tpu_custom_call.1} parent=230 // loop_body
            %v364 = vld [vmem:[%s362] sm:%s355]
            %365 = vst [vmem:[%s363] sm:%s355] %v364
          $region236: #{tpu_custom_call.1} parent=230 // loop_footer
            %s361 = sadd.s32 1, %s357
          $region237: #{tpu_custom_call.1} parent=230 // loop_footer_branch
            %356 = sbr.rel target = $region233
          $region238: #{tpu_custom_call.1} parent=230 // loop_exit
            _
        $region231: #{tpu_custom_call.1} parent=215 // pred_fallthru
          _
      $region216: #{tpu_custom_call.1} parent=29 // pred_fallthru
        _
      // Predicated region
      $region217: #{tpu_custom_call.1} parent=29 // pred_check
        _
      $region218: #{tpu_custom_call.1} parent=29 // pred_check_branch
        %339 = sbr.rel (0) target = $region220
      $region219: #{tpu_custom_call.1} parent=29 // pred_region
        %s341 = ssub.s32 2, 1
        loop: start=0, step=1, limit=1
        $region221: #{tpu_custom_call.1} parent=219 // loop_pre_header
          _
        $region222: #{tpu_custom_call.1} parent=219 // loop_header
          %s343 = sphi 0, %s347
          %p344 = scmp.ge.s32.totalorder %s343, 1
          %s348 = sphi %s333, %s333
          %s349 = sphi %s335, %s335
        $region223: #{tpu_custom_call.1} parent=219 // loop_header_branch
          %346 = sbr.rel (%p344) target = $region227
        $region224: #{tpu_custom_call.1} parent=219 // loop_body
          %v350 = vld [vmem:[%s348] sm:%s341]
          %351 = vst [vmem:[%s349] sm:%s341] %v350
        $region225: #{tpu_custom_call.1} parent=219 // loop_footer
          %s347 = sadd.s32 1, %s343
        $region226: #{tpu_custom_call.1} parent=219 // loop_footer_branch
          %342 = sbr.rel target = $region222
        $region227: #{tpu_custom_call.1} parent=219 // loop_exit
          _
      $region220: #{tpu_custom_call.1} parent=29 // pred_fallthru
        _
      // Predicated region
      $region239: #{tpu_custom_call.1} parent=29 // pred_check
        _
      $region240: #{tpu_custom_call.1} parent=29 // pred_check_branch
        %368 = sbr.rel (0) target = $region242
      $region241: #{tpu_custom_call.1} parent=29 // pred_region
        %369 = vsyncadd [#allocation3], 16
      $region242: #{tpu_custom_call.1} parent=29 // pred_fallthru
        _
      %s370 = sadd.s32 %s73, 7
      %s371 = sadd.s32 %s74, %s370
      %s372 = smul.u32 %s371, 128
      %s373 = sadd.s32 %s372, %s79
      %s374 = sld [smem:[#allocation5 + %s373]]
      %s375 = scalar_lea.vmem [#allocation11], %s374
      %s376 = sadd.s32 %s68, 896
      %s377 = scalar_lea.vmem [#allocation2], %s376
      // Predicated region
      $region243: #{tpu_custom_call.1} parent=29 // pred_check
        _
      $region244: #{tpu_custom_call.1} parent=29 // pred_check_branch
        %379 = sbr.rel target = $region246
      $region245: #{tpu_custom_call.1} parent=29 // pred_region
        // Predicated region
        $region258: #{tpu_custom_call.1} parent=245 // pred_check
          _
        $region259: #{tpu_custom_call.1} parent=245 // pred_check_branch
          %395 = sbr.rel (0) target = $region261
        $region260: #{tpu_custom_call.1} parent=245 // pred_region
          %s397 = ssub.s32 2, 1
          loop: start=0, step=1, limit=1
          $region262: #{tpu_custom_call.1} parent=260 // loop_pre_header
            _
          $region263: #{tpu_custom_call.1} parent=260 // loop_header
            %s399 = sphi 0, %s403
            %p400 = scmp.ge.s32.totalorder %s399, 1
            %s404 = sphi %s375, %s375
            %s405 = sphi %s377, %s377
          $region264: #{tpu_custom_call.1} parent=260 // loop_header_branch
            %402 = sbr.rel (%p400) target = $region268
          $region265: #{tpu_custom_call.1} parent=260 // loop_body
            %v406 = vld [vmem:[%s404] sm:%s397]
            %407 = vst [vmem:[%s405] sm:%s397] %v406
          $region266: #{tpu_custom_call.1} parent=260 // loop_footer
            %s403 = sadd.s32 1, %s399
          $region267: #{tpu_custom_call.1} parent=260 // loop_footer_branch
            %398 = sbr.rel target = $region263
          $region268: #{tpu_custom_call.1} parent=260 // loop_exit
            _
        $region261: #{tpu_custom_call.1} parent=245 // pred_fallthru
          _
      $region246: #{tpu_custom_call.1} parent=29 // pred_fallthru
        _
      // Predicated region
      $region247: #{tpu_custom_call.1} parent=29 // pred_check
        _
      $region248: #{tpu_custom_call.1} parent=29 // pred_check_branch
        %381 = sbr.rel (0) target = $region250
      $region249: #{tpu_custom_call.1} parent=29 // pred_region
        %s383 = ssub.s32 2, 1
        loop: start=0, step=1, limit=1
        $region251: #{tpu_custom_call.1} parent=249 // loop_pre_header
          _
        $region252: #{tpu_custom_call.1} parent=249 // loop_header
          %s385 = sphi 0, %s389
          %p386 = scmp.ge.s32.totalorder %s385, 1
          %s390 = sphi %s375, %s375
          %s391 = sphi %s377, %s377
        $region253: #{tpu_custom_call.1} parent=249 // loop_header_branch
          %388 = sbr.rel (%p386) target = $region257
        $region254: #{tpu_custom_call.1} parent=249 // loop_body
          %v392 = vld [vmem:[%s390] sm:%s383]
          %393 = vst [vmem:[%s391] sm:%s383] %v392
        $region255: #{tpu_custom_call.1} parent=249 // loop_footer
          %s389 = sadd.s32 1, %s385
        $region256: #{tpu_custom_call.1} parent=249 // loop_footer_branch
          %384 = sbr.rel target = $region252
        $region257: #{tpu_custom_call.1} parent=249 // loop_exit
          _
      $region250: #{tpu_custom_call.1} parent=29 // pred_fallthru
        _
      // Predicated region
      $region269: #{tpu_custom_call.1} parent=29 // pred_check
        _
      $region270: #{tpu_custom_call.1} parent=29 // pred_check_branch
        %410 = sbr.rel (0) target = $region272
      $region271: #{tpu_custom_call.1} parent=29 // pred_region
        %411 = vsyncadd [#allocation3], 16
      $region272: #{tpu_custom_call.1} parent=29 // pred_fallthru
        _
    $region30: #{tpu_custom_call.1} parent=1 // loop_footer
      %s72 = sadd.s32 1, %s68
    $region31: #{tpu_custom_call.1} parent=1 // loop_footer_branch
      %67 = sbr.rel target = $region27
    $region32: #{tpu_custom_call.1} parent=1 // loop_exit
      _
    %s412 = smul.u32 8, 128
    %s413 = smul.u32 %s412, 1
    %s414 = sshll.u32 %s413, 4
    %415 = dma.done [#allocation3], %s414
    %v416 = vld [vmem:[#allocation6] sm:$0x1]
    %v417 = vld [vmem:[#allocation2] sm:$0xff]
    %v418 = vld [vmem:[#allocation2 + $0x8] sm:$0xff]
    %v419 = vld [vmem:[#allocation2 + $0x10] sm:$0xff]
    %v420 = vld [vmem:[#allocation2 + $0x18] sm:$0xff]
    %v421 = vld [vmem:[#allocation2 + $0x20] sm:$0xff]
    %v422 = vld [vmem:[#allocation2 + $0x28] sm:$0xff]
    %v423 = vld [vmem:[#allocation2 + $0x30] sm:$0xff]
    %v424 = vld [vmem:[#allocation2 + $0x38] sm:$0xff]
    %v425 = vld [vmem:[#allocation2 + $0x40] sm:$0xff]
    %v426 = vld [vmem:[#allocation2 + $0x48] sm:$0xff]
    %v427 = vld [vmem:[#allocation2 + $0x50] sm:$0xff]
    %v428 = vld [vmem:[#allocation2 + $0x58] sm:$0xff]
    %v429 = vld [vmem:[#allocation2 + $0x60] sm:$0xff]
    %v430 = vld [vmem:[#allocation2 + $0x68] sm:$0xff]
    %v431 = vld [vmem:[#allocation2 + $0x70] sm:$0xff]
    %v432 = vld [vmem:[#allocation2 + $0x78] sm:$0xff]
    %v433 = vld [vmem:[#allocation9] sm:$0x1]
    %434 = vmatpush.xpose.msra.mxu0 %v432
    %435 = vmatpush.xpose.msra.mxu0 %v431
    %436 = vmatpush.xpose.msra.mxu0 %v430
    %437 = vmatpush.xpose.msra.mxu0 %v429
    %438 = vmatpush.xpose.msra.mxu0 %v428
    %439 = vmatpush.xpose.msra.mxu0 %v427
    %440 = vmatpush.xpose.msra.mxu0 %v426
    %441 = vmatpush.xpose.msra.mxu0 %v425
    %442 = vmatpush.xpose.msra.mxu0 %v424
    %443 = vmatpush.xpose.msra.mxu0 %v423
    %444 = vmatpush.xpose.msra.mxu0 %v422
    %445 = vmatpush.xpose.msra.mxu0 %v421
    %446 = vmatpush.xpose.msra.mxu0 %v420
    %447 = vmatpush.xpose.msra.mxu0 %v419
    %448 = vmatpush.xpose.msra.mxu0 %v418
    %449 = vmatpush.xpose.msra.mxu0 %v417
    %450 = vmatmul.f32.gmra.mxu0 %v416
    %v451 = vpop.f32.mrf.mxu0
    %v452 = vadd.f32 %v433, %v451
    %453 = vdwg.mxu0
    %454 = vst [vmem:[#allocation12] sm:$0x1] %v452
    %v455 = vld [vmem:[#allocation6 + $0x1] sm:$0x1]
    %s456 = scalar_lea.vmem [#allocation2], 128
    %v457 = vld [vmem:[%s456] sm:$0xff]
    %v458 = vld [vmem:[%s456 + $0x8] sm:$0xff]
    %v459 = vld [vmem:[%s456 + $0x10] sm:$0xff]
    %v460 = vld [vmem:[%s456 + $0x18] sm:$0xff]
    %v461 = vld [vmem:[%s456 + $0x20] sm:$0xff]
    %v462 = vld [vmem:[%s456 + $0x28] sm:$0xff]
    %v463 = vld [vmem:[%s456 + $0x30] sm:$0xff]
    %v464 = vld [vmem:[%s456 + $0x38] sm:$0xff]
    %v465 = vld [vmem:[%s456 + $0x40] sm:$0xff]
    %v466 = vld [vmem:[%s456 + $0x48] sm:$0xff]
    %v467 = vld [vmem:[%s456 + $0x50] sm:$0xff]
    %v468 = vld [vmem:[%s456 + $0x58] sm:$0xff]
    %v469 = vld [vmem:[%s456 + $0x60] sm:$0xff]
    %v470 = vld [vmem:[%s456 + $0x68] sm:$0xff]
    %v471 = vld [vmem:[%s456 + $0x70] sm:$0xff]
    %v472 = vld [vmem:[%s456 + $0x78] sm:$0xff]
    %v473 = vld [vmem:[#allocation9 + $0x1] sm:$0x1]
    %474 = vmatpush.xpose.msra.mxu0 %v472
    %475 = vmatpush.xpose.msra.mxu0 %v471
    %476 = vmatpush.xpose.msra.mxu0 %v470
    %477 = vmatpush.xpose.msra.mxu0 %v469
    %478 = vmatpush.xpose.msra.mxu0 %v468
    %479 = vmatpush.xpose.msra.mxu0 %v467
    %480 = vmatpush.xpose.msra.mxu0 %v466
    %481 = vmatpush.xpose.msra.mxu0 %v465
    %482 = vmatpush.xpose.msra.mxu0 %v464
    %483 = vmatpush.xpose.msra.mxu0 %v463
    %484 = vmatpush.xpose.msra.mxu0 %v462
    %485 = vmatpush.xpose.msra.mxu0 %v461
    %486 = vmatpush.xpose.msra.mxu0 %v460
    %487 = vmatpush.xpose.msra.mxu0 %v459
    %488 = vmatpush.xpose.msra.mxu0 %v458
    %489 = vmatpush.xpose.msra.mxu0 %v457
    %490 = vmatmul.f32.gmra.mxu0 %v455
    %v491 = vpop.f32.mrf.mxu0
    %v492 = vadd.f32 %v473, %v491
    %493 = vdwg.mxu0
    %494 = vst [vmem:[#allocation12 + $0x1] sm:$0x1] %v492
    %v495 = vld [vmem:[#allocation6 + $0x2] sm:$0x1]
    %s496 = scalar_lea.vmem [#allocation2], 256
    %v497 = vld [vmem:[%s496] sm:$0xff]
    %v498 = vld [vmem:[%s496 + $0x8] sm:$0xff]
    %v499 = vld [vmem:[%s496 + $0x10] sm:$0xff]
    %v500 = vld [vmem:[%s496 + $0x18] sm:$0xff]
    %v501 = vld [vmem:[%s496 + $0x20] sm:$0xff]
    %v502 = vld [vmem:[%s496 + $0x28] sm:$0xff]
    %v503 = vld [vmem:[%s496 + $0x30] sm:$0xff]
    %v504 = vld [vmem:[%s496 + $0x38] sm:$0xff]
    %v505 = vld [vmem:[%s496 + $0x40] sm:$0xff]
    %v506 = vld [vmem:[%s496 + $0x48] sm:$0xff]
    %v507 = vld [vmem:[%s496 + $0x50] sm:$0xff]
    %v508 = vld [vmem:[%s496 + $0x58] sm:$0xff]
    %v509 = vld [vmem:[%s496 + $0x60] sm:$0xff]
    %v510 = vld [vmem:[%s496 + $0x68] sm:$0xff]
    %v511 = vld [vmem:[%s496 + $0x70] sm:$0xff]
    %v512 = vld [vmem:[%s496 + $0x78] sm:$0xff]
    %v513 = vld [vmem:[#allocation9 + $0x2] sm:$0x1]
    %514 = vmatpush.xpose.msra.mxu0 %v512
    %515 = vmatpush.xpose.msra.mxu0 %v511
    %516 = vmatpush.xpose.msra.mxu0 %v510
    %517 = vmatpush.xpose.msra.mxu0 %v509
    %518 = vmatpush.xpose.msra.mxu0 %v508
    %519 = vmatpush.xpose.msra.mxu0 %v507
    %520 = vmatpush.xpose.msra.mxu0 %v506
    %521 = vmatpush.xpose.msra.mxu0 %v505
    %522 = vmatpush.xpose.msra.mxu0 %v504
    %523 = vmatpush.xpose.msra.mxu0 %v503
    %524 = vmatpush.xpose.msra.mxu0 %v502
    %525 = vmatpush.xpose.msra.mxu0 %v501
    %526 = vmatpush.xpose.msra.mxu0 %v500
    %527 = vmatpush.xpose.msra.mxu0 %v499
    %528 = vmatpush.xpose.msra.mxu0 %v498
    %529 = vmatpush.xpose.msra.mxu0 %v497
    %530 = vmatmul.f32.gmra.mxu0 %v495
    %v531 = vpop.f32.mrf.mxu0
    %v532 = vadd.f32 %v513, %v531
    %533 = vdwg.mxu0
    %534 = vst [vmem:[#allocation12 + $0x2] sm:$0x1] %v532
    %v535 = vld [vmem:[#allocation6 + $0x3] sm:$0x1]
    %s536 = scalar_lea.vmem [#allocation2], 384
    %v537 = vld [vmem:[%s536] sm:$0xff]
    %v538 = vld [vmem:[%s536 + $0x8] sm:$0xff]
    %v539 = vld [vmem:[%s536 + $0x10] sm:$0xff]
    %v540 = vld [vmem:[%s536 + $0x18] sm:$0xff]
    %v541 = vld [vmem:[%s536 + $0x20] sm:$0xff]
    %v542 = vld [vmem:[%s536 + $0x28] sm:$0xff]
    %v543 = vld [vmem:[%s536 + $0x30] sm:$0xff]
    %v544 = vld [vmem:[%s536 + $0x38] sm:$0xff]
    %v545 = vld [vmem:[%s536 + $0x40] sm:$0xff]
    %v546 = vld [vmem:[%s536 + $0x48] sm:$0xff]
    %v547 = vld [vmem:[%s536 + $0x50] sm:$0xff]
    %v548 = vld [vmem:[%s536 + $0x58] sm:$0xff]
    %v549 = vld [vmem:[%s536 + $0x60] sm:$0xff]
    %v550 = vld [vmem:[%s536 + $0x68] sm:$0xff]
    %v551 = vld [vmem:[%s536 + $0x70] sm:$0xff]
    %v552 = vld [vmem:[%s536 + $0x78] sm:$0xff]
    %v553 = vld [vmem:[#allocation9 + $0x3] sm:$0x1]
    %554 = vmatpush.xpose.msra.mxu0 %v552
    %555 = vmatpush.xpose.msra.mxu0 %v551
    %556 = vmatpush.xpose.msra.mxu0 %v550
    %557 = vmatpush.xpose.msra.mxu0 %v549
    %558 = vmatpush.xpose.msra.mxu0 %v548
    %559 = vmatpush.xpose.msra.mxu0 %v547
    %560 = vmatpush.xpose.msra.mxu0 %v546
    %561 = vmatpush.xpose.msra.mxu0 %v545
    %562 = vmatpush.xpose.msra.mxu0 %v544
    %563 = vmatpush.xpose.msra.mxu0 %v543
    %564 = vmatpush.xpose.msra.mxu0 %v542
    %565 = vmatpush.xpose.msra.mxu0 %v541
    %566 = vmatpush.xpose.msra.mxu0 %v540
    %567 = vmatpush.xpose.msra.mxu0 %v539
    %568 = vmatpush.xpose.msra.mxu0 %v538
    %569 = vmatpush.xpose.msra.mxu0 %v537
    %570 = vmatmul.f32.gmra.mxu0 %v535
    %v571 = vpop.f32.mrf.mxu0
    %v572 = vadd.f32 %v553, %v571
    %573 = vdwg.mxu0
    %574 = vst [vmem:[#allocation12 + $0x3] sm:$0x1] %v572
    %v575 = vld [vmem:[#allocation6 + $0x4] sm:$0x1]
    %s576 = scalar_lea.vmem [#allocation2], 512
    %v577 = vld [vmem:[%s576] sm:$0xff]
    %v578 = vld [vmem:[%s576 + $0x8] sm:$0xff]
    %v579 = vld [vmem:[%s576 + $0x10] sm:$0xff]
    %v580 = vld [vmem:[%s576 + $0x18] sm:$0xff]
    %v581 = vld [vmem:[%s576 + $0x20] sm:$0xff]
    %v582 = vld [vmem:[%s576 + $0x28] sm:$0xff]
    %v583 = vld [vmem:[%s576 + $0x30] sm:$0xff]
    %v584 = vld [vmem:[%s576 + $0x38] sm:$0xff]
    %v585 = vld [vmem:[%s576 + $0x40] sm:$0xff]
    %v586 = vld [vmem:[%s576 + $0x48] sm:$0xff]
    %v587 = vld [vmem:[%s576 + $0x50] sm:$0xff]
    %v588 = vld [vmem:[%s576 + $0x58] sm:$0xff]
    %v589 = vld [vmem:[%s576 + $0x60] sm:$0xff]
    %v590 = vld [vmem:[%s576 + $0x68] sm:$0xff]
    %v591 = vld [vmem:[%s576 + $0x70] sm:$0xff]
    %v592 = vld [vmem:[%s576 + $0x78] sm:$0xff]
    %v593 = vld [vmem:[#allocation9 + $0x4] sm:$0x1]
    %594 = vmatpush.xpose.msra.mxu0 %v592
    %595 = vmatpush.xpose.msra.mxu0 %v591
    %596 = vmatpush.xpose.msra.mxu0 %v590
    %597 = vmatpush.xpose.msra.mxu0 %v589
    %598 = vmatpush.xpose.msra.mxu0 %v588
    %599 = vmatpush.xpose.msra.mxu0 %v587
    %600 = vmatpush.xpose.msra.mxu0 %v586
    %601 = vmatpush.xpose.msra.mxu0 %v585
    %602 = vmatpush.xpose.msra.mxu0 %v584
    %603 = vmatpush.xpose.msra.mxu0 %v583
    %604 = vmatpush.xpose.msra.mxu0 %v582
    %605 = vmatpush.xpose.msra.mxu0 %v581
    %606 = vmatpush.xpose.msra.mxu0 %v580
    %607 = vmatpush.xpose.msra.mxu0 %v579
    %608 = vmatpush.xpose.msra.mxu0 %v578
    %609 = vmatpush.xpose.msra.mxu0 %v577
    %610 = vmatmul.f32.gmra.mxu0 %v575
    %v611 = vpop.f32.mrf.mxu0
    %v612 = vadd.f32 %v593, %v611
    %613 = vdwg.mxu0
    %614 = vst [vmem:[#allocation12 + $0x4] sm:$0x1] %v612
    %v615 = vld [vmem:[#allocation6 + $0x5] sm:$0x1]
    %s616 = scalar_lea.vmem [#allocation2], 640
    %v617 = vld [vmem:[%s616] sm:$0xff]
    %v618 = vld [vmem:[%s616 + $0x8] sm:$0xff]
    %v619 = vld [vmem:[%s616 + $0x10] sm:$0xff]
    %v620 = vld [vmem:[%s616 + $0x18] sm:$0xff]
    %v621 = vld [vmem:[%s616 + $0x20] sm:$0xff]
    %v622 = vld [vmem:[%s616 + $0x28] sm:$0xff]
    %v623 = vld [vmem:[%s616 + $0x30] sm:$0xff]
    %v624 = vld [vmem:[%s616 + $0x38] sm:$0xff]
    %v625 = vld [vmem:[%s616 + $0x40] sm:$0xff]
    %v626 = vld [vmem:[%s616 + $0x48] sm:$0xff]
    %v627 = vld [vmem:[%s616 + $0x50] sm:$0xff]
    %v628 = vld [vmem:[%s616 + $0x58] sm:$0xff]
    %v629 = vld [vmem:[%s616 + $0x60] sm:$0xff]
    %v630 = vld [vmem:[%s616 + $0x68] sm:$0xff]
    %v631 = vld [vmem:[%s616 + $0x70] sm:$0xff]
    %v632 = vld [vmem:[%s616 + $0x78] sm:$0xff]
    %v633 = vld [vmem:[#allocation9 + $0x5] sm:$0x1]
    %634 = vmatpush.xpose.msra.mxu0 %v632
    %635 = vmatpush.xpose.msra.mxu0 %v631
    %636 = vmatpush.xpose.msra.mxu0 %v630
    %637 = vmatpush.xpose.msra.mxu0 %v629
    %638 = vmatpush.xpose.msra.mxu0 %v628
    %639 = vmatpush.xpose.msra.mxu0 %v627
    %640 = vmatpush.xpose.msra.mxu0 %v626
    %641 = vmatpush.xpose.msra.mxu0 %v625
    %642 = vmatpush.xpose.msra.mxu0 %v624
    %643 = vmatpush.xpose.msra.mxu0 %v623
    %644 = vmatpush.xpose.msra.mxu0 %v622
    %645 = vmatpush.xpose.msra.mxu0 %v621
    %646 = vmatpush.xpose.msra.mxu0 %v620
    %647 = vmatpush.xpose.msra.mxu0 %v619
    %648 = vmatpush.xpose.msra.mxu0 %v618
    %649 = vmatpush.xpose.msra.mxu0 %v617
    %650 = vmatmul.f32.gmra.mxu0 %v615
    %v651 = vpop.f32.mrf.mxu0
    %v652 = vadd.f32 %v633, %v651
    %653 = vdwg.mxu0
    %654 = vst [vmem:[#allocation12 + $0x5] sm:$0x1] %v652
    %v655 = vld [vmem:[#allocation6 + $0x6] sm:$0x1]
    %s656 = scalar_lea.vmem [#allocation2], 768
    %v657 = vld [vmem:[%s656] sm:$0xff]
    %v658 = vld [vmem:[%s656 + $0x8] sm:$0xff]
    %v659 = vld [vmem:[%s656 + $0x10] sm:$0xff]
    %v660 = vld [vmem:[%s656 + $0x18] sm:$0xff]
    %v661 = vld [vmem:[%s656 + $0x20] sm:$0xff]
    %v662 = vld [vmem:[%s656 + $0x28] sm:$0xff]
    %v663 = vld [vmem:[%s656 + $0x30] sm:$0xff]
    %v664 = vld [vmem:[%s656 + $0x38] sm:$0xff]
    %v665 = vld [vmem:[%s656 + $0x40] sm:$0xff]
    %v666 = vld [vmem:[%s656 + $0x48] sm:$0xff]
    %v667 = vld [vmem:[%s656 + $0x50] sm:$0xff]
    %v668 = vld [vmem:[%s656 + $0x58] sm:$0xff]
    %v669 = vld [vmem:[%s656 + $0x60] sm:$0xff]
    %v670 = vld [vmem:[%s656 + $0x68] sm:$0xff]
    %v671 = vld [vmem:[%s656 + $0x70] sm:$0xff]
    %v672 = vld [vmem:[%s656 + $0x78] sm:$0xff]
    %v673 = vld [vmem:[#allocation9 + $0x6] sm:$0x1]
    %674 = vmatpush.xpose.msra.mxu0 %v672
    %675 = vmatpush.xpose.msra.mxu0 %v671
    %676 = vmatpush.xpose.msra.mxu0 %v670
    %677 = vmatpush.xpose.msra.mxu0 %v669
    %678 = vmatpush.xpose.msra.mxu0 %v668
    %679 = vmatpush.xpose.msra.mxu0 %v667
    %680 = vmatpush.xpose.msra.mxu0 %v666
    %681 = vmatpush.xpose.msra.mxu0 %v665
    %682 = vmatpush.xpose.msra.mxu0 %v664
    %683 = vmatpush.xpose.msra.mxu0 %v663
    %684 = vmatpush.xpose.msra.mxu0 %v662
    %685 = vmatpush.xpose.msra.mxu0 %v661
    %686 = vmatpush.xpose.msra.mxu0 %v660
    %687 = vmatpush.xpose.msra.mxu0 %v659
    %688 = vmatpush.xpose.msra.mxu0 %v658
    %689 = vmatpush.xpose.msra.mxu0 %v657
    %690 = vmatmul.f32.gmra.mxu0 %v655
    %v691 = vpop.f32.mrf.mxu0
    %v692 = vadd.f32 %v673, %v691
    %693 = vdwg.mxu0
    %694 = vst [vmem:[#allocation12 + $0x6] sm:$0x1] %v692
    %v695 = vld [vmem:[#allocation6 + $0x7] sm:$0x1]
    %s696 = scalar_lea.vmem [#allocation2], 896
    %v697 = vld [vmem:[%s696] sm:$0xff]
    %v698 = vld [vmem:[%s696 + $0x8] sm:$0xff]
    %v699 = vld [vmem:[%s696 + $0x10] sm:$0xff]
    %v700 = vld [vmem:[%s696 + $0x18] sm:$0xff]
    %v701 = vld [vmem:[%s696 + $0x20] sm:$0xff]
    %v702 = vld [vmem:[%s696 + $0x28] sm:$0xff]
    %v703 = vld [vmem:[%s696 + $0x30] sm:$0xff]
    %v704 = vld [vmem:[%s696 + $0x38] sm:$0xff]
    %v705 = vld [vmem:[%s696 + $0x40] sm:$0xff]
    %v706 = vld [vmem:[%s696 + $0x48] sm:$0xff]
    %v707 = vld [vmem:[%s696 + $0x50] sm:$0xff]
    %v708 = vld [vmem:[%s696 + $0x58] sm:$0xff]
    %v709 = vld [vmem:[%s696 + $0x60] sm:$0xff]
    %v710 = vld [vmem:[%s696 + $0x68] sm:$0xff]
    %v711 = vld [vmem:[%s696 + $0x70] sm:$0xff]
    %v712 = vld [vmem:[%s696 + $0x78] sm:$0xff]
    %v713 = vld [vmem:[#allocation9 + $0x7] sm:$0x1]
    %714 = vmatpush.xpose.msra.mxu0 %v712
    %715 = vmatpush.xpose.msra.mxu0 %v711
    %716 = vmatpush.xpose.msra.mxu0 %v710
    %717 = vmatpush.xpose.msra.mxu0 %v709
    %718 = vmatpush.xpose.msra.mxu0 %v708
    %719 = vmatpush.xpose.msra.mxu0 %v707
    %720 = vmatpush.xpose.msra.mxu0 %v706
    %721 = vmatpush.xpose.msra.mxu0 %v705
    %722 = vmatpush.xpose.msra.mxu0 %v704
    %723 = vmatpush.xpose.msra.mxu0 %v703
    %724 = vmatpush.xpose.msra.mxu0 %v702
    %725 = vmatpush.xpose.msra.mxu0 %v701
    %726 = vmatpush.xpose.msra.mxu0 %v700
    %727 = vmatpush.xpose.msra.mxu0 %v699
    %728 = vmatpush.xpose.msra.mxu0 %v698
    %729 = vmatpush.xpose.msra.mxu0 %v697
    %730 = vmatmul.f32.gmra.mxu0 %v695
    %v731 = vpop.f32.mrf.mxu0
    %v732 = vadd.f32 %v713, %v731
    %733 = vdwg.mxu0
    %734 = vst [vmem:[#allocation12 + $0x7] sm:$0x1] %v732
    // Predicated region
    $region273: #{tpu_custom_call.1} parent=1 // pred_check
      _
    $region274: #{tpu_custom_call.1} parent=1 // pred_check_branch
      %736 = sbr.rel (0) target = $region276
    $region275: #{tpu_custom_call.1} parent=1 // pred_region
      %738 = vsyncadd [#allocation8], 0
      %s740 = sshll.u32 [#allocation12], 4
      %s741 = int_to_ptr.vmem [resolvable:$true] %s740
      %s742 = sshll.u32 %s4, 4
      %s743 = int_to_ptr.hbm [resolvable:$true] %s742
      %745 = dma.vmem_to_hbm [thread:$0]  %s741, 128, %s743, [#allocation8]
    $region276: #{tpu_custom_call.1} parent=1 // pred_fallthru
      _
    // Predicated region
    $region277: #{tpu_custom_call.1} parent=1 // pred_check
      _
    $region278: #{tpu_custom_call.1} parent=1 // pred_check_branch
      %747 = sbr.rel (0) target = $region280
    $region279: #{tpu_custom_call.1} parent=1 // pred_region
      %749 = dma.done [#allocation8], 128
    $region280: #{tpu_custom_call.1} parent=1 // pred_fallthru
      _
    %750 = vsyncpa [#allocation7], 1
    %751 = vsyncpa [#allocation10], 1
    %752 = vsyncpa [#allocation8], 1
  %753 = vsyncmov [#allocation3]
  %s754 = vpop.sfrf %753
  %p755 = scmp.eq.s32.totalorder %s754, 0
  %p756 = pneg %p755
  %758 = shalt.err (%p756)
  %s759 = scalar_lea.sflag [#allocation3], 1
  %760 = vsyncmov %s759
  %s761 = vpop.sfrf %760
  %p762 = scmp.eq.s32.totalorder %s761, 0
  %p763 = pneg %p762
  %765 = shalt.err (%p763)

</llo_original>
